<compile_context>
chip_gen: v5e
topology: v5e:2x2
jax: 0.10.0
libtpu: 0.0.40
codegen_flags: <defaults>
</compile_context>

<pallas_src>
import math
from functools import partial

import numpy as np
import jax
import jax.numpy as jnp
from jax.experimental import pallas as pl
from jax.experimental.pallas import tpu as pltpu


# ---------------------------------------------------------------------------
# Kernel: one grid step processes a block of C_BLK clients at once.  All the
# clients' embedding rows are folded into the matmul M dimension so the trunk
# runs as a handful of MXU matmuls per step instead of one tiny matmul per
# client.
# ---------------------------------------------------------------------------
def _hyper_kernel(num_hidden, c_blk, r_max, *refs):
    if num_hidden > 0:
        (emb_ref, w1_ref, b1_ref, wh_ref, bh_ref,
         wfc_ref, bfc_ref, mask_ref, out_ref) = refs
    else:
        emb_ref, w1_ref, b1_ref, wfc_ref, bfc_ref, mask_ref, out_ref = refs
        wh_ref = bh_ref = None

    # Trunk: Linear(E -> hidm) + ReLU on all C_BLK*R_max rows at once.
    x = emb_ref[0]                                                  # (M, E)
    h = jnp.dot(x, w1_ref[...], preferred_element_type=jnp.float32)
    h = jnp.maximum(h + b1_ref[...], 0.0)                           # (M, hidm)

    # (hidden_layers - 1) x [Linear(hidm -> hidm) + ReLU], statically unrolled.
    # Weights are read through per-layer Ref views to keep vreg pressure low.
    # TODO(synk): for hidm >= 512 / many layers, K-tile these matmuls and
    # stream wh one layer at a time from HBM (pl.ANY + make_async_copy) instead
    # of keeping the whole stack resident (v7x has only 64 MiB VMEM).
    for l in range(num_hidden):
        h = jnp.dot(h, wh_ref[l], preferred_element_type=jnp.float32)
        h = jnp.maximum(h + bh_ref[l], 0.0)

    # All R_max per-row fc heads as ONE lane-dense MXU matmul against the
    # flattened head stack (hidm, W_pad), W_pad a multiple of 128:
    #   big[i, r*O + o] = h[i, :] @ wfc[r][:, o]
    # then pick each row's diagonal O-block with a precomputed f32 mask
    # (single VPU multiply) and reduce the R_max rows of each client.
    # TODO(synk): for R_max > ~8 switch to a batched lax.dot_general over the
    # head axis to avoid the R_max-fold redundant MXU FLOPs.
    big = jnp.dot(h, wfc_ref[...], preferred_element_type=jnp.float32)  # (M, W_pad)
    picked = big * mask_ref[...]
    w_pad = picked.shape[-1]
    res = jnp.sum(picked.reshape(c_blk, r_max, w_pad), axis=1)          # (C_BLK, W_pad)
    out_ref[0] = res + bfc_ref[...]


# ---------------------------------------------------------------------------
# Parameter construction (deterministic, mirrors nn.Module.__init__ shapes).
# ---------------------------------------------------------------------------
def init_params(key, clients_message, embedding_dim, hnet_output_size,
                hidden_layers, hidm, norm_var=0.002):
    n_clients = len(clients_message)
    num_hidden = hidden_layers - 1
    n_fc = math.ceil(clients_message[0] / hnet_output_size)

    n_keys = n_clients + 2 + 2 * num_hidden + 2 * n_fc
    keys = list(jax.random.split(key, n_keys))

    def next_key():
        return keys.pop(0)

    # embeddings: Parameter ~ N(0, norm_var), shape (ceil(pn/O), E)
    embeddings = []
    for pn in clients_message:
        rows = math.ceil(pn / hnet_output_size)
        embeddings.append(
            norm_var * jax.random.normal(next_key(), (rows, embedding_dim),
                                         dtype=jnp.float32))

    def linear(fan_in, fan_out):
        bound = 1.0 / math.sqrt(fan_in)
        w = jax.random.uniform(next_key(), (fan_in, fan_out), jnp.float32,
                               -bound, bound)
        b = jax.random.uniform(next_key(), (fan_out,), jnp.float32,
                               -bound, bound)
        return w, b

    w1, b1 = linear(embedding_dim, hidm)

    if num_hidden > 0:
        whs, bhs = [], []
        for _ in range(num_hidden):
            w, b = linear(hidm, hidm)
            whs.append(w)
            bhs.append(b.reshape(1, hidm))
        wh = jnp.stack(whs)                     # (NH, hidm, hidm)
        bh = jnp.stack(bhs)                     # (NH, 1, hidm)
    else:
        wh = None
        bh = None

    wfcs, bfcs = [], []
    for _ in range(n_fc):
        w, b = linear(hidm, hnet_output_size)
        wfcs.append(w)
        bfcs.append(b)
    wfc = jnp.stack(wfcs)                       # (n_fc, hidm, O)
    bfc = jnp.stack(bfcs)                       # (n_fc, O)

    return {
        "embeddings": embeddings,
        "w1": w1, "b1": b1.reshape(1, hidm),
        "wh": wh, "bh": bh,
        "wfc": wfc, "bfc": bfc,
        "num_hidden": num_hidden,
    }


# ---------------------------------------------------------------------------
# Batched wrapper: ALL clients in one pallas_call.  Returns a list with one
# flat parameter vector per client (same values as the per-idx PyTorch
# forward).
# ---------------------------------------------------------------------------
def cnn_hyper_forward_all(params, clients_message, hnet_output_size,
                          clients_per_step=None):
    n_clients = len(clients_message)
    O = hnet_output_size
    R_list = [math.ceil(pn / O) for pn in clients_message]
    R_max = max(R_list)

    E = params["embeddings"][0].shape[1]
    hidm = params["w1"].shape[1]
    num_hidden = params["num_hidden"]
    n_fc = params["wfc"].shape[0]
    # The module sizes its fc head list from clients_message[0]; every other
    # client must need at most that many heads (same implicit assumption as
    # the PyTorch forward, made explicit here).
    assert n_fc >= R_max, "clients_message[0] must imply the max head count"

    # Client blocking: fold several clients into the matmul M dimension to
    # amortize per-grid-step overhead.  Keep >= 2 grid steps so both
    # TensorCores get work on v7x (v5e/v6e have one TC; full collapse there
    # would also be fine).
    if clients_per_step is None:
        clients_per_step = max(1, math.ceil(n_clients / 2))
    C_BLK = max(1, min(clients_per_step, n_clients))
    n_steps = math.ceil(n_clients / C_BLK)
    n_pad = n_steps * C_BLK
    M = C_BLK * R_max

    # Embeddings: pad each client to R_max rows, pad the client axis to a
    # whole number of blocks, and fold (C_BLK, R_max) into one M axis.
    # Garbage produced by the zero-padded rows only ever lands in output
    # columns >= clients_message[i], which the final truncation strips.
    emb_all = jnp.stack([
        jnp.pad(e, ((0, R_max - e.shape[0]), (0, 0)))
        for e in params["embeddings"]
    ])                                                      # (n_clients, R_max, E)
    if n_pad > n_clients:
        emb_all = jnp.pad(emb_all, ((0, n_pad - n_clients), (0, 0), (0, 0)))
    emb_all = emb_all.reshape(n_steps, M, E)

    # Flatten the fc head stack and pad the output width to a multiple of 128
    # lanes so the result store is an unmasked, lane-dense vst.
    W = R_max * O
    W_pad = max(128, ((W + 127) // 128) * 128)
    wfc = params["wfc"][:R_max]                             # (R_max, hidm, O)
    wfc_flat = jnp.transpose(wfc, (1, 0, 2)).reshape(hidm, W)
    wfc_flat = jnp.pad(wfc_flat, ((0, 0), (0, W_pad - W)))
    bfc_flat = jnp.pad(params["bfc"][:R_max].reshape(1, W),
                       ((0, 0), (0, W_pad - W)))

    # Block-diagonal head-pick mask, built once on the host and shipped as a
    # tiny single-buffered constant input.
    mask_np = np.zeros((M, W_pad), np.float32)
    for i in range(M):
        r = i % R_max
        mask_np[i, r * O:(r + 1) * O] = 1.0
    mask = jnp.asarray(mask_np)

    def _nbytes(shape):
        return int(np.prod(shape)) * 4

    def build_and_run(single_buffer):
        def const_spec(shape):
            imap = {2: lambda c: (0, 0), 3: lambda c: (0, 0, 0)}[len(shape)]
            if single_buffer:
                # Constant-index blocks never change across the grid; single-
                # buffering halves their VMEM footprint.
                return pl.BlockSpec(shape, imap, pipeline_mode=pl.Buffered(1))
            return pl.BlockSpec(shape, imap)

        in_specs = [
            pl.BlockSpec((1, M, E), lambda c: (c, 0, 0)),   # per-step embeddings
            const_spec((E, hidm)),                          # w1
            const_spec((1, hidm)),                          # b1
        ]
        args = [emb_all, params["w1"], params["b1"]]

        if num_hidden > 0:
            NH = num_hidden
            in_specs += [const_spec((NH, hidm, hidm)), const_spec((NH, 1, hidm))]
            args += [params["wh"], params["bh"]]

        in_specs += [
            const_spec((hidm, W_pad)),                      # flattened fc weights
            const_spec((1, W_pad)),                         # fc biases
            const_spec((M, W_pad)),                         # head-pick mask
        ]
        args += [wfc_flat, bfc_flat, mask]

        # Explicit VMEM budget sized from resident blocks + buffer counts
        # (v5e's scoped default is only 16 MiB).
        wbuf = 1 if single_buffer else 2
        vmem = (2 * _nbytes((1, M, E)) + 2 * _nbytes((1, C_BLK, W_pad))
                + wbuf * (_nbytes((E, hidm)) + _nbytes((1, hidm))
                          + _nbytes((hidm, W_pad)) + _nbytes((1, W_pad))
                          + _nbytes((M, W_pad))))
        if num_hidden > 0:
            vmem += wbuf * (_nbytes((num_hidden, hidm, hidm))
                            + _nbytes((num_hidden, 1, hidm)))
        vmem_limit = int(min(64 * 1024 * 1024, max(8 * 1024 * 1024, 4 * vmem)))

        call = pl.pallas_call(
            partial(_hyper_kernel, num_hidden, C_BLK, R_max),
            out_shape=jax.ShapeDtypeStruct((n_steps, C_BLK, W_pad), jnp.float32),
            grid=(n_steps,),
            in_specs=in_specs,
            out_specs=pl.BlockSpec((1, C_BLK, W_pad), lambda c: (c, 0, 0)),
            compiler_params=pltpu.CompilerParams(
                dimension_semantics=("parallel",),
                vmem_limit_bytes=vmem_limit),
        )
        return call(*args)

    # TODO(synk): optionally cast trunk weights/activations to bf16 for the
    # MXU (halves weight DMA/VMEM) once a relaxed (~1e-2) tolerance vs f32 is
    # acceptable for the generated parameters.
    try:
        out_all = build_and_run(single_buffer=True)
    except Exception:
        # pipeline_mode / pl.Buffered unavailable on this jax build: fall back
        # to default double-buffered specs (identical semantics).
        out_all = build_and_run(single_buffer=False)

    # torch.cat(client_param, dim=0)[:clients_message[idx]] per client.
    flat = out_all.reshape(n_pad, W_pad)
    return [flat[i, :clients_message[i]] for i in range(n_clients)]


# ---------------------------------------------------------------------------
# Pure-JAX reference (mirrors the PyTorch forward) for verification.
# ---------------------------------------------------------------------------
def reference_forward(idx, params, clients_message, hnet_output_size):
    emb = params["embeddings"][idx]
    h = jnp.maximum(emb @ params["w1"] + params["b1"], 0.0)
    for l in range(params["num_hidden"]):
        h = jnp.maximum(h @ params["wh"][l] + params["bh"][l], 0.0)
    R = emb.shape[0]
    outs = [h[i] @ params["wfc"][i] + params["bfc"][i] for i in range(R)]
    flat = jnp.concatenate(outs, axis=0)
    return flat[:clients_message[idx]]


if __name__ == "__main__":
    # Small, deterministic configuration consistent with the module.  Client 0
    # has the largest parameter count (the module sizes its fc list from it).
    clients_message = [50, 40, 48, 33]   # parameter counts per client
    embedding_dim = 32
    hnet_output_size = 16
    hidden_layers = 2                    # -> 1 extra (hidm, hidm) trunk layer
    hidm = 32

    params = init_params(jax.random.PRNGKey(0), clients_message, embedding_dim,
                         hnet_output_size, hidden_layers, hidm)

    outs = cnn_hyper_forward_all(params, clients_message, hnet_output_size)
    outs = jax.block_until_ready(outs)

    ok = True
    for idx in range(len(clients_message)):
        ref = reference_forward(idx, params, clients_message, hnet_output_size)
        if outs[idx].shape != (clients_message[idx],):
            ok = False
        if not jnp.allclose(outs[idx], ref, atol=1e-5, rtol=1e-5):
            ok = False

    print("KERNEL_OK" if ok else "KERNEL_MISMATCH")
</pallas_src>

<mosaic_0001>
module attributes {stable_mosaic.version = 11 : i64} {
  func.func @_hyper_kernel(%arg0: i32, %arg1: memref<1x8x32xf32, #tpu.memory_space<vmem>>, %arg2: memref<32x32xf32, #tpu.memory_space<vmem>>, %arg3: memref<1x32xf32, #tpu.memory_space<vmem>>, %arg4: memref<1x32x32xf32, #tpu.memory_space<vmem>>, %arg5: memref<1x1x32xf32, #tpu.memory_space<vmem>>, %arg6: memref<32x128xf32, #tpu.memory_space<vmem>>, %arg7: memref<1x128xf32, #tpu.memory_space<vmem>>, %arg8: memref<8x128xf32, #tpu.memory_space<vmem>>, %arg9: memref<1x2x128xf32, #tpu.memory_space<vmem>>) attributes {dimension_semantics = [#tpu.dimension_semantics<parallel>], iteration_bounds = array<i64: 2>, scalar_prefetch = 0 : i64, scratch_operands = 0 : i64, tpu.core_type = #tpu.core_type<tc>, window_params = [{transform_indices = @transform_0, window_bounds = array<i64: 1, 8, 32>}, {pipeline_mode = #tpu.pipeline_mode<synchronous>, transform_indices = @transform_1, window_bounds = array<i64: 32, 32>}, {pipeline_mode = #tpu.pipeline_mode<synchronous>, transform_indices = @transform_2, window_bounds = array<i64: 1, 32>}, {pipeline_mode = #tpu.pipeline_mode<synchronous>, transform_indices = @transform_3, window_bounds = array<i64: 1, 32, 32>}, {pipeline_mode = #tpu.pipeline_mode<synchronous>, transform_indices = @transform_4, window_bounds = array<i64: 1, 1, 32>}, {pipeline_mode = #tpu.pipeline_mode<synchronous>, transform_indices = @transform_5, window_bounds = array<i64: 32, 128>}, {pipeline_mode = #tpu.pipeline_mode<synchronous>, transform_indices = @transform_6, window_bounds = array<i64: 1, 128>}, {pipeline_mode = #tpu.pipeline_mode<synchronous>, transform_indices = @transform_7, window_bounds = array<i64: 8, 128>}, {transform_indices = @transform_8, window_bounds = array<i64: 1, 2, 128>}]} {
    %c0 = arith.constant 0 : index
    %c0_0 = arith.constant 0 : index
    %c0_1 = arith.constant 0 : index
    %0 = vector.load %arg1[%c0, %c0_0, %c0_1] : memref<1x8x32xf32, #tpu.memory_space<vmem>>, vector<1x8x32xf32>
    %1 = vector.shape_cast %0 : vector<1x8x32xf32> to vector<8x32xf32>
    %c0_2 = arith.constant 0 : index
    %c0_3 = arith.constant 0 : index
    %2 = vector.load %arg2[%c0_2, %c0_3] : memref<32x32xf32, #tpu.memory_space<vmem>>, vector<32x32xf32>
    %cst = arith.constant dense<0.000000e+00> : vector<8x32xf32>
    %3 = tpu.matmul %1, %2, %cst {dimension_numbers = #tpu.dot_dimension_numbers<[1], [0], [0], [1], [0, 0, 1, 1], [], []>} : vector<8x32xf32>, vector<32x32xf32>, vector<8x32xf32> -> vector<8x32xf32>
    %c0_4 = arith.constant 0 : index
    %c0_5 = arith.constant 0 : index
    %4 = vector.load %arg3[%c0_4, %c0_5] : memref<1x32xf32, #tpu.memory_space<vmem>>, vector<1x32xf32>
    %5 = vector.broadcast %4 : vector<1x32xf32> to vector<8x32xf32>
    %6 = arith.addf %3, %5 : vector<8x32xf32>
    %cst_6 = arith.constant 0.000000e+00 : f32
    %7 = vector.broadcast %cst_6 : f32 to vector<8x32xf32>
    %8 = arith.maximumf %6, %7 : vector<8x32xf32>
    %c0_7 = arith.constant 0 : index
    %c0_8 = arith.constant 0 : index
    %c0_9 = arith.constant 0 : index
    %9 = vector.load %arg4[%c0_7, %c0_8, %c0_9] : memref<1x32x32xf32, #tpu.memory_space<vmem>>, vector<1x32x32xf32>
    %10 = vector.shape_cast %9 : vector<1x32x32xf32> to vector<32x32xf32>
    %cst_10 = arith.constant dense<0.000000e+00> : vector<8x32xf32>
    %11 = tpu.matmul %8, %10, %cst_10 {dimension_numbers = #tpu.dot_dimension_numbers<[1], [0], [0], [1], [0, 0, 1, 1], [], []>} : vector<8x32xf32>, vector<32x32xf32>, vector<8x32xf32> -> vector<8x32xf32>
    %c0_11 = arith.constant 0 : index
    %c0_12 = arith.constant 0 : index
    %c0_13 = arith.constant 0 : index
    %12 = vector.load %arg5[%c0_11, %c0_12, %c0_13] : memref<1x1x32xf32, #tpu.memory_space<vmem>>, vector<1x1x32xf32>
    %13 = vector.shape_cast %12 : vector<1x1x32xf32> to vector<1x32xf32>
    %14 = vector.broadcast %13 : vector<1x32xf32> to vector<8x32xf32>
    %15 = arith.addf %11, %14 : vector<8x32xf32>
    %cst_14 = arith.constant 0.000000e+00 : f32
    %16 = vector.broadcast %cst_14 : f32 to vector<8x32xf32>
    %17 = arith.maximumf %15, %16 : vector<8x32xf32>
    %c0_15 = arith.constant 0 : index
    %c0_16 = arith.constant 0 : index
    %18 = vector.load %arg6[%c0_15, %c0_16] : memref<32x128xf32, #tpu.memory_space<vmem>>, vector<32x128xf32>
    %cst_17 = arith.constant dense<0.000000e+00> : vector<8x128xf32>
    %19 = tpu.matmul %17, %18, %cst_17 {dimension_numbers = #tpu.dot_dimension_numbers<[1], [0], [0], [1], [0, 0, 1, 1], [], []>} : vector<8x32xf32>, vector<32x128xf32>, vector<8x128xf32> -> vector<8x128xf32>
    %c0_18 = arith.constant 0 : index
    %c0_19 = arith.constant 0 : index
    %20 = vector.load %arg8[%c0_18, %c0_19] : memref<8x128xf32, #tpu.memory_space<vmem>>, vector<8x128xf32>
    %21 = arith.mulf %19, %20 : vector<8x128xf32>
    %22 = vector.shape_cast %21 : vector<8x128xf32> to vector<2x4x128xf32>
    %cst_20 = arith.constant dense<0.000000e+00> : vector<2x128xf32>
    %23 = vector.multi_reduction <add>, %22, %cst_20 [1] : vector<2x4x128xf32> to vector<2x128xf32>
    %c0_21 = arith.constant 0 : index
    %c0_22 = arith.constant 0 : index
    %24 = vector.load %arg7[%c0_21, %c0_22] : memref<1x128xf32, #tpu.memory_space<vmem>>, vector<1x128xf32>
    %25 = vector.broadcast %24 : vector<1x128xf32> to vector<2x128xf32>
    %26 = arith.addf %23, %25 : vector<2x128xf32>
    %c0_23 = arith.constant 0 : index
    %c0_24 = arith.constant 0 : index
    %c0_25 = arith.constant 0 : index
    %27 = vector.load %arg9[%c0_23, %c0_24, %c0_25] : memref<1x2x128xf32, #tpu.memory_space<vmem>>, vector<1x2x128xf32>
    %28 = vector.shape_cast %27 : vector<1x2x128xf32> to vector<2x128xf32>
    %29 = vector.shape_cast %26 : vector<2x128xf32> to vector<1x2x128xf32>
    tpu.vector_store %arg9[%c0_23, %c0_24, %c0_25], %29 {strides = array<i32>} : memref<1x2x128xf32, #tpu.memory_space<vmem>>, vector<1x2x128xf32>,
    return
  }
  func.func @transform_0(%arg0: i32) -> (i32, i32, i32) {
    %c0_i32 = arith.constant 0 : i32
    %c0_i32_0 = arith.constant 0 : i32
    %c0_i32_1 = arith.constant 0 : i32
    return %arg0, %c0_i32, %c0_i32_0 : i32, i32, i32
  }
  func.func @transform_1(%arg0: i32) -> (i32, i32) {
    %c0_i32 = arith.constant 0 : i32
    %c0_i32_0 = arith.constant 0 : i32
    %c0_i32_1 = arith.constant 0 : i32
    return %c0_i32, %c0_i32_0 : i32, i32
  }
  func.func @transform_2(%arg0: i32) -> (i32, i32) {
    %c0_i32 = arith.constant 0 : i32
    %c0_i32_0 = arith.constant 0 : i32
    %c0_i32_1 = arith.constant 0 : i32
    return %c0_i32, %c0_i32_0 : i32, i32
  }
  func.func @transform_3(%arg0: i32) -> (i32, i32, i32) {
    %c0_i32 = arith.constant 0 : i32
    %c0_i32_0 = arith.constant 0 : i32
    %c0_i32_1 = arith.constant 0 : i32
    %c0_i32_2 = arith.constant 0 : i32
    return %c0_i32, %c0_i32_0, %c0_i32_1 : i32, i32, i32
  }
  func.func @transform_4(%arg0: i32) -> (i32, i32, i32) {
    %c0_i32 = arith.constant 0 : i32
    %c0_i32_0 = arith.constant 0 : i32
    %c0_i32_1 = arith.constant 0 : i32
    %c0_i32_2 = arith.constant 0 : i32
    return %c0_i32, %c0_i32_0, %c0_i32_1 : i32, i32, i32
  }
  func.func @transform_5(%arg0: i32) -> (i32, i32) {
    %c0_i32 = arith.constant 0 : i32
    %c0_i32_0 = arith.constant 0 : i32
    %c0_i32_1 = arith.constant 0 : i32
    return %c0_i32, %c0_i32_0 : i32, i32
  }
  func.func @transform_6(%arg0: i32) -> (i32, i32) {
    %c0_i32 = arith.constant 0 : i32
    %c0_i32_0 = arith.constant 0 : i32
    %c0_i32_1 = arith.constant 0 : i32
    return %c0_i32, %c0_i32_0 : i32, i32
  }
  func.func @transform_7(%arg0: i32) -> (i32, i32) {
    %c0_i32 = arith.constant 0 : i32
    %c0_i32_0 = arith.constant 0 : i32
    %c0_i32_1 = arith.constant 0 : i32
    return %c0_i32, %c0_i32_0 : i32, i32
  }
  func.func @transform_8(%arg0: i32) -> (i32, i32, i32) {
    %c0_i32 = arith.constant 0 : i32
    %c0_i32_0 = arith.constant 0 : i32
    %c0_i32_1 = arith.constant 0 : i32
    return %arg0, %c0_i32, %c0_i32_0 : i32, i32, i32
  }
}

module attributes {stable_mosaic.version = 11 : i64} {
  func.func @_hyper_kernel(%arg0: i32, %arg1: memref<1x8x32xf32, #tpu.memory_space<vmem>>, %arg2: memref<32x32xf32, #tpu.memory_space<vmem>>, %arg3: memref<1x32xf32, #tpu.memory_space<vmem>>, %arg4: memref<1x32x32xf32, #tpu.memory_space<vmem>>, %arg5: memref<1x1x32xf32, #tpu.memory_space<vmem>>, %arg6: memref<32x128xf32, #tpu.memory_space<vmem>>, %arg7: memref<1x128xf32, #tpu.memory_space<vmem>>, %arg8: memref<8x128xf32, #tpu.memory_space<vmem>>, %arg9: memref<1x2x128xf32, #tpu.memory_space<vmem>>) attributes {dimension_semantics = [#tpu.dimension_semantics<parallel>], iteration_bounds = array<i64: 2>, scalar_prefetch = 0 : i64, scratch_operands = 0 : i64, tpu.core_type = #tpu.core_type<tc>, window_params = [{transform_indices = @transform_0, window_bounds = array<i64: 1, 8, 32>}, {pipeline_mode = #tpu.pipeline_mode<synchronous>, transform_indices = @transform_1, window_bounds = array<i64: 32, 32>}, {pipeline_mode = #tpu.pipeline_mode<synchronous>, transform_indices = @transform_2, window_bounds = array<i64: 1, 32>}, {pipeline_mode = #tpu.pipeline_mode<synchronous>, transform_indices = @transform_3, window_bounds = array<i64: 1, 32, 32>}, {pipeline_mode = #tpu.pipeline_mode<synchronous>, transform_indices = @transform_4, window_bounds = array<i64: 1, 1, 32>}, {pipeline_mode = #tpu.pipeline_mode<synchronous>, transform_indices = @transform_5, window_bounds = array<i64: 32, 128>}, {pipeline_mode = #tpu.pipeline_mode<synchronous>, transform_indices = @transform_6, window_bounds = array<i64: 1, 128>}, {pipeline_mode = #tpu.pipeline_mode<synchronous>, transform_indices = @transform_7, window_bounds = array<i64: 8, 128>}, {transform_indices = @transform_8, window_bounds = array<i64: 1, 2, 128>}]} {
    %c0 = arith.constant 0 : index
    %c0_0 = arith.constant 0 : index
    %c0_1 = arith.constant 0 : index
    %0 = vector.load %arg1[%c0, %c0_0, %c0_1] : memref<1x8x32xf32, #tpu.memory_space<vmem>>, vector<1x8x32xf32>
    %1 = vector.shape_cast %0 : vector<1x8x32xf32> to vector<8x32xf32>
    %c0_2 = arith.constant 0 : index
    %c0_3 = arith.constant 0 : index
    %2 = vector.load %arg2[%c0_2, %c0_3] : memref<32x32xf32, #tpu.memory_space<vmem>>, vector<32x32xf32>
    %cst = arith.constant dense<0.000000e+00> : vector<8x32xf32>
    %3 = tpu.matmul %1, %2, %cst {dimension_numbers = #tpu.dot_dimension_numbers<[1], [0], [0], [1], [0, 0, 1, 1], [], []>} : vector<8x32xf32>, vector<32x32xf32>, vector<8x32xf32> -> vector<8x32xf32>
    %c0_4 = arith.constant 0 : index
    %c0_5 = arith.constant 0 : index
    %4 = vector.load %arg3[%c0_4, %c0_5] : memref<1x32xf32, #tpu.memory_space<vmem>>, vector<1x32xf32>
    %5 = vector.broadcast %4 : vector<1x32xf32> to vector<8x32xf32>
    %6 = arith.addf %3, %5 : vector<8x32xf32>
    %cst_6 = arith.constant 0.000000e+00 : f32
    %7 = vector.broadcast %cst_6 : f32 to vector<8x32xf32>
    %8 = arith.maximumf %6, %7 : vector<8x32xf32>
    %c0_7 = arith.constant 0 : index
    %c0_8 = arith.constant 0 : index
    %c0_9 = arith.constant 0 : index
    %9 = vector.load %arg4[%c0_7, %c0_8, %c0_9] : memref<1x32x32xf32, #tpu.memory_space<vmem>>, vector<1x32x32xf32>
    %10 = vector.shape_cast %9 : vector<1x32x32xf32> to vector<32x32xf32>
    %cst_10 = arith.constant dense<0.000000e+00> : vector<8x32xf32>
    %11 = tpu.matmul %8, %10, %cst_10 {dimension_numbers = #tpu.dot_dimension_numbers<[1], [0], [0], [1], [0, 0, 1, 1], [], []>} : vector<8x32xf32>, vector<32x32xf32>, vector<8x32xf32> -> vector<8x32xf32>
    %c0_11 = arith.constant 0 : index
    %c0_12 = arith.constant 0 : index
    %c0_13 = arith.constant 0 : index
    %12 = vector.load %arg5[%c0_11, %c0_12, %c0_13] : memref<1x1x32xf32, #tpu.memory_space<vmem>>, vector<1x1x32xf32>
    %13 = vector.shape_cast %12 : vector<1x1x32xf32> to vector<1x32xf32>
    %14 = vector.broadcast %13 : vector<1x32xf32> to vector<8x32xf32>
    %15 = arith.addf %11, %14 : vector<8x32xf32>
    %cst_14 = arith.constant 0.000000e+00 : f32
    %16 = vector.broadcast %cst_14 : f32 to vector<8x32xf32>
    %17 = arith.maximumf %15, %16 : vector<8x32xf32>
    %c0_15 = arith.constant 0 : index
    %c0_16 = arith.constant 0 : index
    %18 = vector.load %arg6[%c0_15, %c0_16] : memref<32x128xf32, #tpu.memory_space<vmem>>, vector<32x128xf32>
    %cst_17 = arith.constant dense<0.000000e+00> : vector<8x128xf32>
    %19 = tpu.matmul %17, %18, %cst_17 {dimension_numbers = #tpu.dot_dimension_numbers<[1], [0], [0], [1], [0, 0, 1, 1], [], []>} : vector<8x32xf32>, vector<32x128xf32>, vector<8x128xf32> -> vector<8x128xf32>
    %c0_18 = arith.constant 0 : index
    %c0_19 = arith.constant 0 : index
    %20 = vector.load %arg8[%c0_18, %c0_19] : memref<8x128xf32, #tpu.memory_space<vmem>>, vector<8x128xf32>
    %21 = arith.mulf %19, %20 : vector<8x128xf32>
    %22 = vector.shape_cast %21 : vector<8x128xf32> to vector<2x4x128xf32>
    %cst_20 = arith.constant dense<0.000000e+00> : vector<2x128xf32>
    %23 = vector.multi_reduction <add>, %22, %cst_20 [1] : vector<2x4x128xf32> to vector<2x128xf32>
    %c0_21 = arith.constant 0 : index
    %c0_22 = arith.constant 0 : index
    %24 = vector.load %arg7[%c0_21, %c0_22] : memref<1x128xf32, #tpu.memory_space<vmem>>, vector<1x128xf32>
    %25 = vector.broadcast %24 : vector<1x128xf32> to vector<2x128xf32>
    %26 = arith.addf %23, %25 : vector<2x128xf32>
    %c0_23 = arith.constant 0 : index
    %c0_24 = arith.constant 0 : index
    %c0_25 = arith.constant 0 : index
    %27 = vector.load %arg9[%c0_23, %c0_24, %c0_25] : memref<1x2x128xf32, #tpu.memory_space<vmem>>, vector<1x2x128xf32>
    %28 = vector.shape_cast %27 : vector<1x2x128xf32> to vector<2x128xf32>
    %29 = vector.shape_cast %26 : vector<2x128xf32> to vector<1x2x128xf32>
    tpu.vector_store %arg9[%c0_23, %c0_24, %c0_25], %29 {strides = array<i32>} : memref<1x2x128xf32, #tpu.memory_space<vmem>>, vector<1x2x128xf32>,
    return
  }
  func.func @transform_0(%arg0: i32) -> (i32, i32, i32) {
    %c0_i32 = arith.constant 0 : i32
    %c0_i32_0 = arith.constant 0 : i32
    %c0_i32_1 = arith.constant 0 : i32
    return %arg0, %c0_i32, %c0_i32_0 : i32, i32, i32
  }
  func.func @transform_1(%arg0: i32) -> (i32, i32) {
    %c0_i32 = arith.constant 0 : i32
    %c0_i32_0 = arith.constant 0 : i32
    %c0_i32_1 = arith.constant 0 : i32
    return %c0_i32, %c0_i32_0 : i32, i32
  }
  func.func @transform_2(%arg0: i32) -> (i32, i32) {
    %c0_i32 = arith.constant 0 : i32
    %c0_i32_0 = arith.constant 0 : i32
    %c0_i32_1 = arith.constant 0 : i32
    return %c0_i32, %c0_i32_0 : i32, i32
  }
  func.func @transform_3(%arg0: i32) -> (i32, i32, i32) {
    %c0_i32 = arith.constant 0 : i32
    %c0_i32_0 = arith.constant 0 : i32
    %c0_i32_1 = arith.constant 0 : i32
    %c0_i32_2 = arith.constant 0 : i32
    return %c0_i32, %c0_i32_0, %c0_i32_1 : i32, i32, i32
  }
  func.func @transform_4(%arg0: i32) -> (i32, i32, i32) {
    %c0_i32 = arith.constant 0 : i32
    %c0_i32_0 = arith.constant 0 : i32
    %c0_i32_1 = arith.constant 0 : i32
    %c0_i32_2 = arith.constant 0 : i32
    return %c0_i32, %c0_i32_0, %c0_i32_1 : i32, i32, i32
  }
  func.func @transform_5(%arg0: i32) -> (i32, i32) {
    %c0_i32 = arith.constant 0 : i32
    %c0_i32_0 = arith.constant 0 : i32
    %c0_i32_1 = arith.constant 0 : i32
    return %c0_i32, %c0_i32_0 : i32, i32
  }
  func.func @transform_6(%arg0: i32) -> (i32, i32) {
    %c0_i32 = arith.constant 0 : i32
    %c0_i32_0 = arith.constant 0 : i32
    %c0_i32_1 = arith.constant 0 : i32
    return %c0_i32, %c0_i32_0 : i32, i32
  }
  func.func @transform_7(%arg0: i32) -> (i32, i32) {
    %c0_i32 = arith.constant 0 : i32
    %c0_i32_0 = arith.constant 0 : i32
    %c0_i32_1 = arith.constant 0 : i32
    return %c0_i32, %c0_i32_0 : i32, i32
  }
  func.func @transform_8(%arg0: i32) -> (i32, i32, i32) {
    %c0_i32 = arith.constant 0 : i32
    %c0_i32_0 = arith.constant 0 : i32
    %c0_i32_1 = arith.constant 0 : i32
    return %arg0, %c0_i32, %c0_i32_0 : i32, i32, i32
  }
}

</mosaic_0001>

<llo_original>
// kernel: tpu_custom_call.1
$region0: #{tpu_custom_call.1}
  #allocation0 [shape = 'u32[]', space=smem, size = 0x4, offset = 0x4, fixed_abs, tag = 'smem constant byte address 0x4 - core index']
  #allocation1 [shape = 'u32[72,128]{1,0:T(1,128)}', space=vmem, size = 0x9000, scoped, tag = 'internal scratch']
  %s0 = inlined_call_operand.hbm [shape: f32[2,8,32], index: 0, kind: input, shape index: {}]
  %s1 = inlined_call_operand.hbm [shape: f32[32,32], index: 1, kind: input, shape index: {}]
  %s2 = inlined_call_operand.vmem [shape: f32[1,32], index: 2, kind: input, shape index: {}]
  %s3 = inlined_call_operand.hbm [shape: f32[1,32,32], index: 3, kind: input, shape index: {}]
  %s4 = inlined_call_operand.vmem [shape: f32[1,1,32], index: 4, kind: input, shape index: {}]
  %s5 = inlined_call_operand.hbm [shape: f32[32,128], index: 5, kind: input, shape index: {}]
  %s6 = inlined_call_operand.vmem [shape: f32[1,128], index: 6, kind: input, shape index: {}]
  %s7 = inlined_call_operand.hbm [shape: f32[8,128], index: 7, kind: input, shape index: {}]
  %s8 = inlined_call_operand.hbm [shape: f32[2,2,128], index: 8, kind: output, shape index: {}]
  %s9 = sld [smem:[#allocation0]]
  $region85: #{tpu_custom_call.1} parent=0
    _
  %s11 = ssub.s32 1, %s9
  %s12 = scalar_select 0, %s11, %s9
  $region1: #{tpu_custom_call.1} parent=0
    #allocation2 [shape = 'u8[8192]{0}', space=vmem, size = 0x2000, scoped, tag = 'input window, operand 0']
    #allocation3 [shape = 's32[2]{0}', space=sflag, size = 0x8, scoped, tag = 'scoped memory for tpu_custom_call.1']
    #allocation4 [shape = 's32[2]{0}', space=sflag, size = 0x8, scoped, tag = 'scoped memory for tpu_custom_call.1']
    #allocation5 [shape = 'u8[16384]{0}', space=vmem, size = 0x4000, scoped, tag = 'input window, operand 1, single buffered']
    #allocation6 [shape = 's32[1]{0}', space=sflag, size = 0x4, scoped, tag = 'scoped memory for tpu_custom_call.1']
    #allocation7 [shape = 'u8[16384]{0}', space=vmem, size = 0x4000, scoped, tag = 'input window, operand 3, single buffered']
    #allocation8 [shape = 'u8[16384]{0}', space=vmem, size = 0x4000, scoped, tag = 'input window, operand 5, single buffered']
    #allocation9 [shape = 's32[1]{0}', space=sflag, size = 0x4, scoped, tag = 'scoped memory for tpu_custom_call.1']
    #allocation10 [shape = 'u8[4096]{0}', space=vmem, size = 0x1000, scoped, tag = 'input window, operand 7, single buffered']
    #allocation11 [shape = 'u8[2048]{0}', space=vmem, size = 0x800, scoped, tag = 'output window, operand 0']
    %13 = vsyncpa [#allocation3], 0
    %s14 = scalar_lea.sflag [#allocation3], 1
    %15 = vsyncpa %s14, 0
    %16 = vsyncpa [#allocation6], 0
    %17 = vsyncpa [#allocation9], 0
    %18 = vsyncpa [#allocation4], 0
    %s19 = scalar_lea.sflag [#allocation4], 1
    %20 = vsyncpa %s19, 0
    loop: start=0, step=1, limit=4
    $region2: #{tpu_custom_call.1} parent=1 // loop_pre_header
      _
    $region3: #{tpu_custom_call.1} parent=1 // loop_header
      %s22 = sphi 0, %s26
      %p23 = scmp.ge.s32.totalorder %s22, 4
      %s32 = sphi 0, %s34
      %s35 = sphi 0, %s32
      %s36 = sphi 0, %s35
      %s52 = sphi 0, %s36
      %s56 = sphi 0, %s56
      %s58 = sphi 0, %s56
      %s59 = sphi 0, %s58
      %s73 = sphi 0, %s59
      %s77 = sphi 0, %s77
      %s79 = sphi 0, %s77
      %s80 = sphi 0, %s79
      %s94 = sphi 0, %s80
      %s98 = sphi 0, %s98
      %s100 = sphi 0, %s98
      %s101 = sphi 0, %s100
      %s115 = sphi 0, %s101
      %s119 = sphi 0, %s119
      %s121 = sphi 0, %s119
      %s122 = sphi 0, %s121
      %s136 = sphi 0, %s122
      %s140 = sphi 0, %s140
      %s142 = sphi 0, %s140
      %s143 = sphi 0, %s142
      %s157 = sphi 0, %s143
      %s161 = sphi 0, %s161
      %s163 = sphi 0, %s161
      %s164 = sphi 0, %s163
      %s178 = sphi 0, %s164
      %s182 = sphi 0, %s182
      %s184 = sphi 0, %s182
      %s185 = sphi 0, %s184
      %s199 = sphi 0, %s185
      %s205 = sphi 0, %s207
      %s208 = sphi 0, %s205
      %s209 = sphi 0, %s208
      %s225 = sphi 0, %s209
    $region4: #{tpu_custom_call.1} parent=1 // loop_header_branch
      %25 = sbr.rel (%p23) target = $region8
    $region5: #{tpu_custom_call.1} parent=1 // loop_body
      %s27 = ssub.s32 %s22, 1
      %s28 = ssub.s32 %s22, 2
      %s29 = sadd.s32 %s22, 1
      %s30 = ssub.s32 %s22, %s29
      %p31 = scmp.eq.s32.totalorder %s30, 0
      %s33 = sadd.s32 %s32, 1
      %s34 = scalar_select %p31, %s32, %s33
      %p37 = pneg %p31
      %p38 = scmp.eq.s32.totalorder %s22, 1
      %p39 = por %p37, %p38
      %p40 = scmp.ne.s32.totalorder %s32, %s35
      %p41 = scmp.eq.s32.totalorder %s22, 0
      %p42 = por %p40, %p41
      %p43 = scmp.ne.s32.totalorder %s32, %s35
      %p44 = scmp.eq.s32.totalorder %s27, 1
      %p45 = por %p43, %p44
      %p46 = scmp.ne.s32.totalorder %s35, %s36
      %p47 = scmp.eq.s32.totalorder %s27, 0
      %p48 = por %p46, %p47
      %p49 = scmp.ne.s32.totalorder %s35, %s36
      %p50 = scmp.eq.s32.totalorder %s28, 1
      %p51 = por %p49, %p50
      %p53 = scmp.ne.s32.totalorder %s36, %s52
      %p54 = scmp.eq.s32.totalorder %s28, 0
      %p55 = por %p53, %p54
      %s57 = sadd.s32 %s56, 1
      %p60 = scmp.eq.s32.totalorder %s22, 1
      %p61 = scmp.ne.s32.totalorder %s56, %s58
      %p62 = scmp.eq.s32.totalorder %s22, 0
      %p63 = por %p61, %p62
      %p64 = scmp.ne.s32.totalorder %s56, %s58
      %p65 = scmp.eq.s32.totalorder %s27, 1
      %p66 = por %p64, %p65
      %p67 = scmp.ne.s32.totalorder %s58, %s59
      %p68 = scmp.eq.s32.totalorder %s27, 0
      %p69 = por %p67, %p68
      %p70 = scmp.ne.s32.totalorder %s58, %s59
      %p71 = scmp.eq.s32.totalorder %s28, 1
      %p72 = por %p70, %p71
      %p74 = scmp.ne.s32.totalorder %s59, %s73
      %p75 = scmp.eq.s32.totalorder %s28, 0
      %p76 = por %p74, %p75
      %s78 = sadd.s32 %s77, 1
      %p81 = scmp.eq.s32.totalorder %s22, 1
      %p82 = scmp.ne.s32.totalorder %s77, %s79
      %p83 = scmp.eq.s32.totalorder %s22, 0
      %p84 = por %p82, %p83
      %p85 = scmp.ne.s32.totalorder %s77, %s79
      %p86 = scmp.eq.s32.totalorder %s27, 1
      %p87 = por %p85, %p86
      %p88 = scmp.ne.s32.totalorder %s79, %s80
      %p89 = scmp.eq.s32.totalorder %s27, 0
      %p90 = por %p88, %p89
      %p91 = scmp.ne.s32.totalorder %s79, %s80
      %p92 = scmp.eq.s32.totalorder %s28, 1
      %p93 = por %p91, %p92
      %p95 = scmp.ne.s32.totalorder %s80, %s94
      %p96 = scmp.eq.s32.totalorder %s28, 0
      %p97 = por %p95, %p96
      %s99 = sadd.s32 %s98, 1
      %p102 = scmp.eq.s32.totalorder %s22, 1
      %p103 = scmp.ne.s32.totalorder %s98, %s100
      %p104 = scmp.eq.s32.totalorder %s22, 0
      %p105 = por %p103, %p104
      %p106 = scmp.ne.s32.totalorder %s98, %s100
      %p107 = scmp.eq.s32.totalorder %s27, 1
      %p108 = por %p106, %p107
      %p109 = scmp.ne.s32.totalorder %s100, %s101
      %p110 = scmp.eq.s32.totalorder %s27, 0
      %p111 = por %p109, %p110
      %p112 = scmp.ne.s32.totalorder %s100, %s101
      %p113 = scmp.eq.s32.totalorder %s28, 1
      %p114 = por %p112, %p113
      %p116 = scmp.ne.s32.totalorder %s101, %s115
      %p117 = scmp.eq.s32.totalorder %s28, 0
      %p118 = por %p116, %p117
      %s120 = sadd.s32 %s119, 1
      %p123 = scmp.eq.s32.totalorder %s22, 1
      %p124 = scmp.ne.s32.totalorder %s119, %s121
      %p125 = scmp.eq.s32.totalorder %s22, 0
      %p126 = por %p124, %p125
      %p127 = scmp.ne.s32.totalorder %s119, %s121
      %p128 = scmp.eq.s32.totalorder %s27, 1
      %p129 = por %p127, %p128
      %p130 = scmp.ne.s32.totalorder %s121, %s122
      %p131 = scmp.eq.s32.totalorder %s27, 0
      %p132 = por %p130, %p131
      %p133 = scmp.ne.s32.totalorder %s121, %s122
      %p134 = scmp.eq.s32.totalorder %s28, 1
      %p135 = por %p133, %p134
      %p137 = scmp.ne.s32.totalorder %s122, %s136
      %p138 = scmp.eq.s32.totalorder %s28, 0
      %p139 = por %p137, %p138
      %s141 = sadd.s32 %s140, 1
      %p144 = scmp.eq.s32.totalorder %s22, 1
      %p145 = scmp.ne.s32.totalorder %s140, %s142
      %p146 = scmp.eq.s32.totalorder %s22, 0
      %p147 = por %p145, %p146
      %p148 = scmp.ne.s32.totalorder %s140, %s142
      %p149 = scmp.eq.s32.totalorder %s27, 1
      %p150 = por %p148, %p149
      %p151 = scmp.ne.s32.totalorder %s142, %s143
      %p152 = scmp.eq.s32.totalorder %s27, 0
      %p153 = por %p151, %p152
      %p154 = scmp.ne.s32.totalorder %s142, %s143
      %p155 = scmp.eq.s32.totalorder %s28, 1
      %p156 = por %p154, %p155
      %p158 = scmp.ne.s32.totalorder %s143, %s157
      %p159 = scmp.eq.s32.totalorder %s28, 0
      %p160 = por %p158, %p159
      %s162 = sadd.s32 %s161, 1
      %p165 = scmp.eq.s32.totalorder %s22, 1
      %p166 = scmp.ne.s32.totalorder %s161, %s163
      %p167 = scmp.eq.s32.totalorder %s22, 0
      %p168 = por %p166, %p167
      %p169 = scmp.ne.s32.totalorder %s161, %s163
      %p170 = scmp.eq.s32.totalorder %s27, 1
      %p171 = por %p169, %p170
      %p172 = scmp.ne.s32.totalorder %s163, %s164
      %p173 = scmp.eq.s32.totalorder %s27, 0
      %p174 = por %p172, %p173
      %p175 = scmp.ne.s32.totalorder %s163, %s164
      %p176 = scmp.eq.s32.totalorder %s28, 1
      %p177 = por %p175, %p176
      %p179 = scmp.ne.s32.totalorder %s164, %s178
      %p180 = scmp.eq.s32.totalorder %s28, 0
      %p181 = por %p179, %p180
      %s183 = sadd.s32 %s182, 1
      %p186 = scmp.eq.s32.totalorder %s22, 1
      %p187 = scmp.ne.s32.totalorder %s182, %s184
      %p188 = scmp.eq.s32.totalorder %s22, 0
      %p189 = por %p187, %p188
      %p190 = scmp.ne.s32.totalorder %s182, %s184
      %p191 = scmp.eq.s32.totalorder %s27, 1
      %p192 = por %p190, %p191
      %p193 = scmp.ne.s32.totalorder %s184, %s185
      %p194 = scmp.eq.s32.totalorder %s27, 0
      %p195 = por %p193, %p194
      %p196 = scmp.ne.s32.totalorder %s184, %s185
      %p197 = scmp.eq.s32.totalorder %s28, 1
      %p198 = por %p196, %p197
      %p200 = scmp.ne.s32.totalorder %s185, %s199
      %p201 = scmp.eq.s32.totalorder %s28, 0
      %p202 = por %p200, %p201
      %s203 = ssub.s32 %s22, %s29
      %p204 = scmp.eq.s32.totalorder %s203, 0
      %s206 = sadd.s32 %s205, 1
      %s207 = scalar_select %p204, %s205, %s206
      %p210 = pneg %p204
      %p211 = scmp.eq.s32.totalorder %s22, 1
      %p212 = por %p210, %p211
      %p213 = scmp.ne.s32.totalorder %s205, %s208
      %p214 = scmp.eq.s32.totalorder %s22, 0
      %p215 = por %p213, %p214
      %p216 = scmp.ne.s32.totalorder %s205, %s208
      %p217 = scmp.eq.s32.totalorder %s27, 1
      %p218 = por %p216, %p217
      %p219 = scmp.ne.s32.totalorder %s208, %s209
      %p220 = scmp.eq.s32.totalorder %s27, 0
      %p221 = por %p219, %p220
      %p222 = scmp.ne.s32.totalorder %s208, %s209
      %p223 = scmp.eq.s32.totalorder %s28, 1
      %p224 = por %p222, %p223
      %p226 = scmp.ne.s32.totalorder %s209, %s225
      %p227 = scmp.eq.s32.totalorder %s28, 0
      %p228 = por %p226, %p227
      %p229 = scmp.le.s32.totalorder 1, %s22
      %p230 = scmp.lt.s32.totalorder %s22, 3
      %p231 = pnand %p229, %p230
      %p232 = pneg %p231
      // Predicated region
      $region9: #{tpu_custom_call.1} parent=5 // pred_check
        _
      $region10: #{tpu_custom_call.1} parent=5 // pred_check_branch
        %234 = sbr.rel (%p231) target = $region12
      $region11: #{tpu_custom_call.1} parent=5 // pred_region
        %s235 = ssub.s32 %s22, 1
        // Predicated region
        $region13: #{tpu_custom_call.1} parent=11 // pred_check
          %p236 = pneg %p69
        $region14: #{tpu_custom_call.1} parent=11 // pred_check_branch
          %238 = sbr.rel (%p236) target = $region16
        $region15: #{tpu_custom_call.1} parent=11 // pred_region
          %240 = vsyncadd [#allocation6], 0
          %s241 = sshll.u32 %s1, 4
          %s242 = int_to_ptr.hbm [resolvable:$true] %s241
          %s243 = sshll.u32 [#allocation5], 4
          %s244 = int_to_ptr.vmem [resolvable:$true] %s243
          %249 = dma.hbm_to_vmem [thread:$0]  %s242, 512, %s244, [#allocation6], 128, 128, 8
        $region16: #{tpu_custom_call.1} parent=11 // pred_fallthru
          _
        // Predicated region
        $region17: #{tpu_custom_call.1} parent=11 // pred_check
          %p250 = pneg %p90
        $region18: #{tpu_custom_call.1} parent=11 // pred_check_branch
          %252 = sbr.rel (%p250) target = $region20
        $region19: #{tpu_custom_call.1} parent=11 // pred_region
          _
        $region20: #{tpu_custom_call.1} parent=11 // pred_fallthru
          _
        // Predicated region
        $region21: #{tpu_custom_call.1} parent=11 // pred_check
          %p253 = pneg %p111
        $region22: #{tpu_custom_call.1} parent=11 // pred_check_branch
          %255 = sbr.rel (%p253) target = $region24
        $region23: #{tpu_custom_call.1} parent=11 // pred_region
          %257 = vsyncadd [#allocation6], 0
          %s258 = sshll.u32 %s3, 4
          %s259 = int_to_ptr.hbm [resolvable:$true] %s258
          %s260 = sshll.u32 [#allocation7], 4
          %s261 = int_to_ptr.vmem [resolvable:$true] %s260
          %266 = dma.hbm_to_vmem [thread:$0]  %s259, 512, %s261, [#allocation6], 128, 128, 8
        $region24: #{tpu_custom_call.1} parent=11 // pred_fallthru
          _
        // Predicated region
        $region25: #{tpu_custom_call.1} parent=11 // pred_check
          %p267 = pneg %p132
        $region26: #{tpu_custom_call.1} parent=11 // pred_check_branch
          %269 = sbr.rel (%p267) target = $region28
        $region27: #{tpu_custom_call.1} parent=11 // pred_region
          _
        $region28: #{tpu_custom_call.1} parent=11 // pred_fallthru
          _
        // Predicated region
        $region29: #{tpu_custom_call.1} parent=11 // pred_check
          %p270 = pneg %p153
        $region30: #{tpu_custom_call.1} parent=11 // pred_check_branch
          %272 = sbr.rel (%p270) target = $region32
        $region31: #{tpu_custom_call.1} parent=11 // pred_region
          %274 = vsyncadd [#allocation9], 0
          %s275 = sshll.u32 %s5, 4
          %s276 = int_to_ptr.hbm [resolvable:$true] %s275
          %s277 = sshll.u32 [#allocation8], 4
          %s278 = int_to_ptr.vmem [resolvable:$true] %s277
          %283 = dma.hbm_to_vmem [thread:$0]  %s276, 512, %s278, [#allocation9], 128, 128, 8
        $region32: #{tpu_custom_call.1} parent=11 // pred_fallthru
          _
        // Predicated region
        $region33: #{tpu_custom_call.1} parent=11 // pred_check
          %p284 = pneg %p174
        $region34: #{tpu_custom_call.1} parent=11 // pred_check_branch
          %286 = sbr.rel (%p284) target = $region36
        $region35: #{tpu_custom_call.1} parent=11 // pred_region
          _
        $region36: #{tpu_custom_call.1} parent=11 // pred_fallthru
          _
        // Predicated region
        $region37: #{tpu_custom_call.1} parent=11 // pred_check
          %p287 = pneg %p195
        $region38: #{tpu_custom_call.1} parent=11 // pred_check_branch
          %289 = sbr.rel (%p287) target = $region40
        $region39: #{tpu_custom_call.1} parent=11 // pred_region
          %291 = vsyncadd [#allocation9], 0
          %s293 = sshll.u32 %s7, 4
          %s294 = int_to_ptr.hbm [resolvable:$true] %s293
          %s295 = sshll.u32 [#allocation10], 4
          %s296 = int_to_ptr.vmem [resolvable:$true] %s295
          %298 = dma.hbm_to_vmem [thread:$0]  %s294, 128, %s296, [#allocation9]
        $region40: #{tpu_custom_call.1} parent=11 // pred_fallthru
          _
      $region12: #{tpu_custom_call.1} parent=5 // pred_fallthru
        _
      %p299 = scmp.lt.s32.totalorder %s22, 2
      // Predicated region
      $region41: #{tpu_custom_call.1} parent=5 // pred_check
        %p300 = pneg %p299
      $region42: #{tpu_custom_call.1} parent=5 // pred_check_branch
        %302 = sbr.rel (%p300) target = $region44
      $region43: #{tpu_custom_call.1} parent=5 // pred_region
        // Predicated region
        $region45: #{tpu_custom_call.1} parent=43 // pred_check
          %p303 = pneg %p42
        $region46: #{tpu_custom_call.1} parent=43 // pred_check_branch
          %305 = sbr.rel (%p303) target = $region48
        $region47: #{tpu_custom_call.1} parent=43 // pred_region
          %s306 = sand.u32 %s32, 1
          %s307 = scalar_lea.sflag [#allocation3], %s306
          %s308 = sand.u32 %s32, 1
          %s309 = smul.addr %s308, 8
          %s310 = scalar_lea.vmem [#allocation2], %s309
          %312 = vsyncadd %s307, 0
          %s313 = smul.addr %s22, 8
          %s314 = scalar_lea.hbm %s0, %s313
          %s316 = sshll.u32 %s314, 4
          %s317 = int_to_ptr.hbm [resolvable:$true] %s316
          %s318 = sshll.u32 %s310, 4
          %s319 = int_to_ptr.vmem [resolvable:$true] %s318
          %321 = dma.hbm_to_vmem [thread:$0]  %s317, 128, %s319, %s307
        $region48: #{tpu_custom_call.1} parent=43 // pred_fallthru
          _
      $region44: #{tpu_custom_call.1} parent=5 // pred_fallthru
        _
      %p322 = scmp.le.s32.totalorder 1, %s22
      %p323 = scmp.lt.s32.totalorder %s22, 3
      %p324 = pnand %p322, %p323
      %p325 = pneg %p324
      // Predicated region
      $region49: #{tpu_custom_call.1} parent=5 // pred_check
        _
      $region50: #{tpu_custom_call.1} parent=5 // pred_check_branch
        %327 = sbr.rel (%p324) target = $region52
      $region51: #{tpu_custom_call.1} parent=5 // pred_region
        %s328 = ssub.s32 %s22, 1
        %s329 = sand.u32 %s35, 1
        %s330 = scalar_lea.sflag [#allocation3], %s329
        %s331 = sand.u32 %s35, 1
        %s332 = smul.addr %s331, 8
        %s333 = scalar_lea.vmem [#allocation2], %s332
        // Predicated region
        $region53: #{tpu_custom_call.1} parent=51 // pred_check
          %p334 = pneg %p48
        $region54: #{tpu_custom_call.1} parent=51 // pred_check_branch
          %336 = sbr.rel (%p334) target = $region56
        $region55: #{tpu_custom_call.1} parent=51 // pred_region
          %338 = dma.done %s330, 128
        $region56: #{tpu_custom_call.1} parent=51 // pred_fallthru
          _
        // Predicated region
        $region57: #{tpu_custom_call.1} parent=51 // pred_check
          %p339 = pneg %p69
        $region58: #{tpu_custom_call.1} parent=51 // pred_check_branch
          %341 = sbr.rel (%p339) target = $region60
        $region59: #{tpu_custom_call.1} parent=51 // pred_region
          %343 = dma.done [#allocation6], 512
        $region60: #{tpu_custom_call.1} parent=51 // pred_fallthru
          _
        // Predicated region
        $region61: #{tpu_custom_call.1} parent=51 // pred_check
          %p344 = pneg %p111
        $region62: #{tpu_custom_call.1} parent=51 // pred_check_branch
          %346 = sbr.rel (%p344) target = $region64
        $region63: #{tpu_custom_call.1} parent=51 // pred_region
          %348 = dma.done [#allocation6], 512
        $region64: #{tpu_custom_call.1} parent=51 // pred_fallthru
          _
        // Predicated region
        $region65: #{tpu_custom_call.1} parent=51 // pred_check
          %p349 = pneg %p153
        $region66: #{tpu_custom_call.1} parent=51 // pred_check_branch
          %351 = sbr.rel (%p349) target = $region68
        $region67: #{tpu_custom_call.1} parent=51 // pred_region
          %353 = dma.done [#allocation9], 512
        $region68: #{tpu_custom_call.1} parent=51 // pred_fallthru
          _
        // Predicated region
        $region69: #{tpu_custom_call.1} parent=51 // pred_check
          %p354 = pneg %p195
        $region70: #{tpu_custom_call.1} parent=51 // pred_check_branch
          %356 = sbr.rel (%p354) target = $region72
        $region71: #{tpu_custom_call.1} parent=51 // pred_region
          %358 = dma.done [#allocation9], 128
        $region72: #{tpu_custom_call.1} parent=51 // pred_fallthru
          _
        %s359 = sand.u32 %s35, 1
        %s360 = scalar_lea.sflag [#allocation3], %s359
        %s361 = sand.u32 %s35, 1
        %s362 = smul.addr %s361, 8
        %s363 = scalar_lea.vmem [#allocation2], %s362
        %p364 = pneg %p48
        %p365 = pneg %p45
        %p366 = pneg %p69
        %p367 = pneg %p66
        %p368 = pneg %p90
        %p369 = pneg %p87
        %p370 = pneg %p111
        %p371 = pneg %p108
        %p372 = pneg %p132
        %p373 = pneg %p129
        %p374 = pneg %p153
        %p375 = pneg %p150
        %p376 = pneg %p174
        %p377 = pneg %p171
        %p378 = pneg %p195
        %p379 = pneg %p192
        %p380 = pneg %p221
        %p381 = pneg %p218
        %s382 = sand.u32 %s208, 1
        %s383 = scalar_lea.sflag [#allocation4], %s382
        %s384 = sand.u32 %s208, 1
        %s385 = smul.addr %s384, 2
        %s386 = scalar_lea.vmem [#allocation11], %s385
        %v387 = vld [vmem:[%s333] sm:$0xff]
        %v388 = vld [vmem:[#allocation5] sm:$0xff]
        %v389 = vld [vmem:[#allocation5 + $0x8] sm:$0xff]
        %v390 = vld [vmem:[#allocation5 + $0x10] sm:$0xff]
        %v391 = vld [vmem:[#allocation5 + $0x18] sm:$0xff]
        %v392 = vld [vmem:[%s2] sm:$0x1]
        %v394 = vperm.slane %v392, 0
        %vm396 = vcmask 261120
        %v398 = vsel %vm396, %v387, 0
        %400 = vmatpush.msra.mxu0 0.0
        %401 = vmatpush.msra.mxu0 0.0
        %402 = vmatpush.msra.mxu0 0.0
        %403 = vmatpush.msra.mxu0 0.0
        %404 = vmatpush.msra.mxu0 0.0
        %405 = vmatpush.msra.mxu0 0.0
        %406 = vmatpush.msra.mxu0 0.0
        %407 = vmatpush.msra.mxu0 0.0
        %408 = vmatpush.msra.mxu0 0.0
        %409 = vmatpush.msra.mxu0 0.0
        %410 = vmatpush.msra.mxu0 0.0
        %411 = vmatpush.msra.mxu0 0.0
        %412 = vmatpush.msra.mxu0 %v391
        %413 = vmatpush.msra.mxu0 %v390
        %414 = vmatpush.msra.mxu0 %v389
        %415 = vmatpush.msra.mxu0 %v388
        %416 = vmatmul.f32.gmra.mxu0 %v398
        %v417 = vpop.f32.mrf.mxu0
        %v418 = vadd.f32 %v394, %v417
        %419 = vdwg.mxu0
        %v420 = vmax.f32 %v418, 0.0
        %v421 = vld [vmem:[#allocation7] sm:$0xff]
        %v422 = vld [vmem:[#allocation7 + $0x8] sm:$0xff]
        %v423 = vld [vmem:[#allocation7 + $0x10] sm:$0xff]
        %v424 = vld [vmem:[#allocation7 + $0x18] sm:$0xff]
        %v425 = vld [vmem:[%s4] sm:$0x1]
        %v427 = vperm.slane %v425, 0
        %v430 = vsel %vm396, %v420, 0
        %432 = vmatpush.msra.mxu0 0.0
        %433 = vmatpush.msra.mxu0 0.0
        %434 = vmatpush.msra.mxu0 0.0
        %435 = vmatpush.msra.mxu0 0.0
        %436 = vmatpush.msra.mxu0 0.0
        %437 = vmatpush.msra.mxu0 0.0
        %438 = vmatpush.msra.mxu0 0.0
        %439 = vmatpush.msra.mxu0 0.0
        %440 = vmatpush.msra.mxu0 0.0
        %441 = vmatpush.msra.mxu0 0.0
        %442 = vmatpush.msra.mxu0 0.0
        %443 = vmatpush.msra.mxu0 0.0
        %444 = vmatpush.msra.mxu0 %v424
        %445 = vmatpush.msra.mxu0 %v423
        %446 = vmatpush.msra.mxu0 %v422
        %447 = vmatpush.msra.mxu0 %v421
        %448 = vmatmul.f32.gmra.mxu0 %v430
        %v449 = vpop.f32.mrf.mxu0
        %v450 = vadd.f32 %v427, %v449
        %451 = vdwg.mxu0
        %v452 = vmax.f32 %v450, 0.0
        %v453 = vld [vmem:[#allocation8] sm:$0xff]
        %v454 = vld [vmem:[#allocation8 + $0x8] sm:$0xff]
        %v455 = vld [vmem:[#allocation8 + $0x10] sm:$0xff]
        %v456 = vld [vmem:[#allocation8 + $0x18] sm:$0xff]
        %v458 = vsel %vm396, %v452, 0
        %460 = vmatpush.msra.mxu0 0.0
        %461 = vmatpush.msra.mxu0 0.0
        %462 = vmatpush.msra.mxu0 0.0
        %463 = vmatpush.msra.mxu0 0.0
        %464 = vmatpush.msra.mxu0 0.0
        %465 = vmatpush.msra.mxu0 0.0
        %466 = vmatpush.msra.mxu0 0.0
        %467 = vmatpush.msra.mxu0 0.0
        %468 = vmatpush.msra.mxu0 0.0
        %469 = vmatpush.msra.mxu0 0.0
        %470 = vmatpush.msra.mxu0 0.0
        %471 = vmatpush.msra.mxu0 0.0
        %472 = vmatpush.msra.mxu0 %v456
        %473 = vmatpush.msra.mxu0 %v455
        %474 = vmatpush.msra.mxu0 %v454
        %475 = vmatpush.msra.mxu0 %v453
        %476 = vmatmul.f32.gmra.mxu0 %v458
        %v477 = vpop.f32.mrf.mxu0
        %v478 = vadd.f32 0.0, %v477
        %479 = vdwg.mxu0
        %v480 = vld [vmem:[#allocation10] sm:$0xff]
        %v481 = vmul.f32 %v478, %v480
        %v483 = vrot.slane %v481, 4
        %vm485 = vcmask 1043456
        %v486 = vsel %vm485, %v481, 0.0
        %v487 = vrot.slane %v486, 4
        %v488 = vadd.f32 %v486, %v487
        %v489 = vrot.slane %v488, 2
        %v490 = vadd.f32 %v488, %v489
        %v491 = vrot.slane %v490, 1
        %v492 = vadd.f32 %v490, %v491
        %v493 = vsel %vm485, %v483, 0.0
        %v494 = vrot.slane %v493, 4
        %v495 = vadd.f32 %v493, %v494
        %v496 = vrot.slane %v495, 2
        %v497 = vadd.f32 %v495, %v496
        %v498 = vrot.slane %v497, 1
        %v499 = vadd.f32 %v497, %v498
        %v500 = vld [vmem:[%s6] sm:$0x1]
        %v502 = vperm.slane %v500, 0
        %v504 = vadd.f32 %v492, %v502
        %v505 = vadd.f32 %v499, %v502
        %v508 = vrot.slane %v505, 7
        %vm509 = vcmask 1041409
        %v510 = vsel %vm509, %v508, %v504
        %512 = vst [vmem:[%s386] sm:$0x3] %v510
        %s513 = sand.u32 %s208, 1
        %s514 = scalar_lea.sflag [#allocation4], %s513
        %s515 = sand.u32 %s208, 1
        %s516 = smul.addr %s515, 2
        %s517 = scalar_lea.vmem [#allocation11], %s516
        // Predicated region
        $region73: #{tpu_custom_call.1} parent=51 // pred_check
          %p518 = pneg %p218
        $region74: #{tpu_custom_call.1} parent=51 // pred_check_branch
          %520 = sbr.rel (%p518) target = $region76
        $region75: #{tpu_custom_call.1} parent=51 // pred_region
          %522 = vsyncadd %s514, 0
          %s523 = smul.addr %s27, 2
          %s524 = scalar_lea.hbm %s8, %s523
          %s526 = sshll.u32 %s517, 4
          %s527 = int_to_ptr.vmem [resolvable:$true] %s526
          %s528 = sshll.u32 %s524, 4
          %s529 = int_to_ptr.hbm [resolvable:$true] %s528
          %531 = dma.vmem_to_hbm [thread:$0]  %s527, 32, %s529, %s514
        $region76: #{tpu_custom_call.1} parent=51 // pred_fallthru
          _
      $region52: #{tpu_custom_call.1} parent=5 // pred_fallthru
        _
      %p532 = scmp.le.s32.totalorder 2, %s22
      // Predicated region
      $region77: #{tpu_custom_call.1} parent=5 // pred_check
        %p533 = pneg %p532
      $region78: #{tpu_custom_call.1} parent=5 // pred_check_branch
        %535 = sbr.rel (%p533) target = $region80
      $region79: #{tpu_custom_call.1} parent=5 // pred_region
        %s536 = ssub.s32 %s22, 2
        // Predicated region
        $region81: #{tpu_custom_call.1} parent=79 // pred_check
          %p537 = pneg %p224
        $region82: #{tpu_custom_call.1} parent=79 // pred_check_branch
          %539 = sbr.rel (%p537) target = $region84
        $region83: #{tpu_custom_call.1} parent=79 // pred_region
          %s540 = sand.u32 %s209, 1
          %s541 = scalar_lea.sflag [#allocation4], %s540
          %s542 = sand.u32 %s209, 1
          %s543 = smul.addr %s542, 2
          %s544 = scalar_lea.vmem [#allocation11], %s543
          %546 = dma.done %s541, 32
        $region84: #{tpu_custom_call.1} parent=79 // pred_fallthru
          _
      $region80: #{tpu_custom_call.1} parent=5 // pred_fallthru
        _
    $region6: #{tpu_custom_call.1} parent=1 // loop_footer
      %s26 = sadd.s32 1, %s22
    $region7: #{tpu_custom_call.1} parent=1 // loop_footer_branch
      %21 = sbr.rel target = $region3
    $region8: #{tpu_custom_call.1} parent=1 // loop_exit
      _
    %547 = vsyncpa [#allocation3], 1
    %s548 = scalar_lea.sflag [#allocation3], 1
    %549 = vsyncpa %s548, 1
    %550 = vsyncpa [#allocation6], 1
    %551 = vsyncpa [#allocation9], 1
    %552 = vsyncpa [#allocation4], 1
    %s553 = scalar_lea.sflag [#allocation4], 1
    %554 = vsyncpa %s553, 1

// kernel: tpu_custom_call.1
$region0: #{tpu_custom_call.1}
  #allocation0 [shape = 'u32[]', space=smem, size = 0x4, offset = 0x4, fixed_abs, tag = 'smem constant byte address 0x4 - core index']
  #allocation1 [shape = 'u32[72,128]{1,0:T(1,128)}', space=vmem, size = 0x9000, scoped, tag = 'internal scratch']
  %s0 = inlined_call_operand.hbm [shape: f32[2,8,32], index: 0, kind: input, shape index: {}]
  %s1 = inlined_call_operand.hbm [shape: f32[32,32], index: 1, kind: input, shape index: {}]
  %s2 = inlined_call_operand.vmem [shape: f32[1,32], index: 2, kind: input, shape index: {}]
  %s3 = inlined_call_operand.hbm [shape: f32[1,32,32], index: 3, kind: input, shape index: {}]
  %s4 = inlined_call_operand.vmem [shape: f32[1,1,32], index: 4, kind: input, shape index: {}]
  %s5 = inlined_call_operand.hbm [shape: f32[32,128], index: 5, kind: input, shape index: {}]
  %s6 = inlined_call_operand.vmem [shape: f32[1,128], index: 6, kind: input, shape index: {}]
  %s7 = inlined_call_operand.hbm [shape: f32[8,128], index: 7, kind: input, shape index: {}]
  %s8 = inlined_call_operand.hbm [shape: f32[2,2,128], index: 8, kind: output, shape index: {}]
  %s9 = sld [smem:[#allocation0]]
  $region85: #{tpu_custom_call.1} parent=0
    _
  %s11 = ssub.s32 1, %s9
  %s12 = scalar_select 0, %s11, %s9
  $region1: #{tpu_custom_call.1} parent=0
    #allocation2 [shape = 'u8[8192]{0}', space=vmem, size = 0x2000, scoped, tag = 'input window, operand 0']
    #allocation3 [shape = 's32[2]{0}', space=sflag, size = 0x8, scoped, tag = 'scoped memory for tpu_custom_call.1']
    #allocation4 [shape = 's32[2]{0}', space=sflag, size = 0x8, scoped, tag = 'scoped memory for tpu_custom_call.1']
    #allocation5 [shape = 'u8[16384]{0}', space=vmem, size = 0x4000, scoped, tag = 'input window, operand 1, single buffered']
    #allocation6 [shape = 's32[1]{0}', space=sflag, size = 0x4, scoped, tag = 'scoped memory for tpu_custom_call.1']
    #allocation7 [shape = 'u8[16384]{0}', space=vmem, size = 0x4000, scoped, tag = 'input window, operand 3, single buffered']
    #allocation8 [shape = 'u8[16384]{0}', space=vmem, size = 0x4000, scoped, tag = 'input window, operand 5, single buffered']
    #allocation9 [shape = 's32[1]{0}', space=sflag, size = 0x4, scoped, tag = 'scoped memory for tpu_custom_call.1']
    #allocation10 [shape = 'u8[4096]{0}', space=vmem, size = 0x1000, scoped, tag = 'input window, operand 7, single buffered']
    #allocation11 [shape = 'u8[2048]{0}', space=vmem, size = 0x800, scoped, tag = 'output window, operand 0']
    %13 = vsyncpa [#allocation3], 0
    %s14 = scalar_lea.sflag [#allocation3], 1
    %15 = vsyncpa %s14, 0
    %16 = vsyncpa [#allocation6], 0
    %17 = vsyncpa [#allocation9], 0
    %18 = vsyncpa [#allocation4], 0
    %s19 = scalar_lea.sflag [#allocation4], 1
    %20 = vsyncpa %s19, 0
    loop: start=0, step=1, limit=4
    $region2: #{tpu_custom_call.1} parent=1 // loop_pre_header
      _
    $region3: #{tpu_custom_call.1} parent=1 // loop_header
      %s22 = sphi 0, %s26
      %p23 = scmp.ge.s32.totalorder %s22, 4
      %s32 = sphi 0, %s34
      %s35 = sphi 0, %s32
      %s36 = sphi 0, %s35
      %s52 = sphi 0, %s36
      %s56 = sphi 0, %s56
      %s58 = sphi 0, %s56
      %s59 = sphi 0, %s58
      %s73 = sphi 0, %s59
      %s77 = sphi 0, %s77
      %s79 = sphi 0, %s77
      %s80 = sphi 0, %s79
      %s94 = sphi 0, %s80
      %s98 = sphi 0, %s98
      %s100 = sphi 0, %s98
      %s101 = sphi 0, %s100
      %s115 = sphi 0, %s101
      %s119 = sphi 0, %s119
      %s121 = sphi 0, %s119
      %s122 = sphi 0, %s121
      %s136 = sphi 0, %s122
      %s140 = sphi 0, %s140
      %s142 = sphi 0, %s140
      %s143 = sphi 0, %s142
      %s157 = sphi 0, %s143
      %s161 = sphi 0, %s161
      %s163 = sphi 0, %s161
      %s164 = sphi 0, %s163
      %s178 = sphi 0, %s164
      %s182 = sphi 0, %s182
      %s184 = sphi 0, %s182
      %s185 = sphi 0, %s184
      %s199 = sphi 0, %s185
      %s205 = sphi 0, %s207
      %s208 = sphi 0, %s205
      %s209 = sphi 0, %s208
      %s225 = sphi 0, %s209
    $region4: #{tpu_custom_call.1} parent=1 // loop_header_branch
      %25 = sbr.rel (%p23) target = $region8
    $region5: #{tpu_custom_call.1} parent=1 // loop_body
      %s27 = ssub.s32 %s22, 1
      %s28 = ssub.s32 %s22, 2
      %s29 = sadd.s32 %s22, 1
      %s30 = ssub.s32 %s22, %s29
      %p31 = scmp.eq.s32.totalorder %s30, 0
      %s33 = sadd.s32 %s32, 1
      %s34 = scalar_select %p31, %s32, %s33
      %p37 = pneg %p31
      %p38 = scmp.eq.s32.totalorder %s22, 1
      %p39 = por %p37, %p38
      %p40 = scmp.ne.s32.totalorder %s32, %s35
      %p41 = scmp.eq.s32.totalorder %s22, 0
      %p42 = por %p40, %p41
      %p43 = scmp.ne.s32.totalorder %s32, %s35
      %p44 = scmp.eq.s32.totalorder %s27, 1
      %p45 = por %p43, %p44
      %p46 = scmp.ne.s32.totalorder %s35, %s36
      %p47 = scmp.eq.s32.totalorder %s27, 0
      %p48 = por %p46, %p47
      %p49 = scmp.ne.s32.totalorder %s35, %s36
      %p50 = scmp.eq.s32.totalorder %s28, 1
      %p51 = por %p49, %p50
      %p53 = scmp.ne.s32.totalorder %s36, %s52
      %p54 = scmp.eq.s32.totalorder %s28, 0
      %p55 = por %p53, %p54
      %s57 = sadd.s32 %s56, 1
      %p60 = scmp.eq.s32.totalorder %s22, 1
      %p61 = scmp.ne.s32.totalorder %s56, %s58
      %p62 = scmp.eq.s32.totalorder %s22, 0
      %p63 = por %p61, %p62
      %p64 = scmp.ne.s32.totalorder %s56, %s58
      %p65 = scmp.eq.s32.totalorder %s27, 1
      %p66 = por %p64, %p65
      %p67 = scmp.ne.s32.totalorder %s58, %s59
      %p68 = scmp.eq.s32.totalorder %s27, 0
      %p69 = por %p67, %p68
      %p70 = scmp.ne.s32.totalorder %s58, %s59
      %p71 = scmp.eq.s32.totalorder %s28, 1
      %p72 = por %p70, %p71
      %p74 = scmp.ne.s32.totalorder %s59, %s73
      %p75 = scmp.eq.s32.totalorder %s28, 0
      %p76 = por %p74, %p75
      %s78 = sadd.s32 %s77, 1
      %p81 = scmp.eq.s32.totalorder %s22, 1
      %p82 = scmp.ne.s32.totalorder %s77, %s79
      %p83 = scmp.eq.s32.totalorder %s22, 0
      %p84 = por %p82, %p83
      %p85 = scmp.ne.s32.totalorder %s77, %s79
      %p86 = scmp.eq.s32.totalorder %s27, 1
      %p87 = por %p85, %p86
      %p88 = scmp.ne.s32.totalorder %s79, %s80
      %p89 = scmp.eq.s32.totalorder %s27, 0
      %p90 = por %p88, %p89
      %p91 = scmp.ne.s32.totalorder %s79, %s80
      %p92 = scmp.eq.s32.totalorder %s28, 1
      %p93 = por %p91, %p92
      %p95 = scmp.ne.s32.totalorder %s80, %s94
      %p96 = scmp.eq.s32.totalorder %s28, 0
      %p97 = por %p95, %p96
      %s99 = sadd.s32 %s98, 1
      %p102 = scmp.eq.s32.totalorder %s22, 1
      %p103 = scmp.ne.s32.totalorder %s98, %s100
      %p104 = scmp.eq.s32.totalorder %s22, 0
      %p105 = por %p103, %p104
      %p106 = scmp.ne.s32.totalorder %s98, %s100
      %p107 = scmp.eq.s32.totalorder %s27, 1
      %p108 = por %p106, %p107
      %p109 = scmp.ne.s32.totalorder %s100, %s101
      %p110 = scmp.eq.s32.totalorder %s27, 0
      %p111 = por %p109, %p110
      %p112 = scmp.ne.s32.totalorder %s100, %s101
      %p113 = scmp.eq.s32.totalorder %s28, 1
      %p114 = por %p112, %p113
      %p116 = scmp.ne.s32.totalorder %s101, %s115
      %p117 = scmp.eq.s32.totalorder %s28, 0
      %p118 = por %p116, %p117
      %s120 = sadd.s32 %s119, 1
      %p123 = scmp.eq.s32.totalorder %s22, 1
      %p124 = scmp.ne.s32.totalorder %s119, %s121
      %p125 = scmp.eq.s32.totalorder %s22, 0
      %p126 = por %p124, %p125
      %p127 = scmp.ne.s32.totalorder %s119, %s121
      %p128 = scmp.eq.s32.totalorder %s27, 1
      %p129 = por %p127, %p128
      %p130 = scmp.ne.s32.totalorder %s121, %s122
      %p131 = scmp.eq.s32.totalorder %s27, 0
      %p132 = por %p130, %p131
      %p133 = scmp.ne.s32.totalorder %s121, %s122
      %p134 = scmp.eq.s32.totalorder %s28, 1
      %p135 = por %p133, %p134
      %p137 = scmp.ne.s32.totalorder %s122, %s136
      %p138 = scmp.eq.s32.totalorder %s28, 0
      %p139 = por %p137, %p138
      %s141 = sadd.s32 %s140, 1
      %p144 = scmp.eq.s32.totalorder %s22, 1
      %p145 = scmp.ne.s32.totalorder %s140, %s142
      %p146 = scmp.eq.s32.totalorder %s22, 0
      %p147 = por %p145, %p146
      %p148 = scmp.ne.s32.totalorder %s140, %s142
      %p149 = scmp.eq.s32.totalorder %s27, 1
      %p150 = por %p148, %p149
      %p151 = scmp.ne.s32.totalorder %s142, %s143
      %p152 = scmp.eq.s32.totalorder %s27, 0
      %p153 = por %p151, %p152
      %p154 = scmp.ne.s32.totalorder %s142, %s143
      %p155 = scmp.eq.s32.totalorder %s28, 1
      %p156 = por %p154, %p155
      %p158 = scmp.ne.s32.totalorder %s143, %s157
      %p159 = scmp.eq.s32.totalorder %s28, 0
      %p160 = por %p158, %p159
      %s162 = sadd.s32 %s161, 1
      %p165 = scmp.eq.s32.totalorder %s22, 1
      %p166 = scmp.ne.s32.totalorder %s161, %s163
      %p167 = scmp.eq.s32.totalorder %s22, 0
      %p168 = por %p166, %p167
      %p169 = scmp.ne.s32.totalorder %s161, %s163
      %p170 = scmp.eq.s32.totalorder %s27, 1
      %p171 = por %p169, %p170
      %p172 = scmp.ne.s32.totalorder %s163, %s164
      %p173 = scmp.eq.s32.totalorder %s27, 0
      %p174 = por %p172, %p173
      %p175 = scmp.ne.s32.totalorder %s163, %s164
      %p176 = scmp.eq.s32.totalorder %s28, 1
      %p177 = por %p175, %p176
      %p179 = scmp.ne.s32.totalorder %s164, %s178
      %p180 = scmp.eq.s32.totalorder %s28, 0
      %p181 = por %p179, %p180
      %s183 = sadd.s32 %s182, 1
      %p186 = scmp.eq.s32.totalorder %s22, 1
      %p187 = scmp.ne.s32.totalorder %s182, %s184
      %p188 = scmp.eq.s32.totalorder %s22, 0
      %p189 = por %p187, %p188
      %p190 = scmp.ne.s32.totalorder %s182, %s184
      %p191 = scmp.eq.s32.totalorder %s27, 1
      %p192 = por %p190, %p191
      %p193 = scmp.ne.s32.totalorder %s184, %s185
      %p194 = scmp.eq.s32.totalorder %s27, 0
      %p195 = por %p193, %p194
      %p196 = scmp.ne.s32.totalorder %s184, %s185
      %p197 = scmp.eq.s32.totalorder %s28, 1
      %p198 = por %p196, %p197
      %p200 = scmp.ne.s32.totalorder %s185, %s199
      %p201 = scmp.eq.s32.totalorder %s28, 0
      %p202 = por %p200, %p201
      %s203 = ssub.s32 %s22, %s29
      %p204 = scmp.eq.s32.totalorder %s203, 0
      %s206 = sadd.s32 %s205, 1
      %s207 = scalar_select %p204, %s205, %s206
      %p210 = pneg %p204
      %p211 = scmp.eq.s32.totalorder %s22, 1
      %p212 = por %p210, %p211
      %p213 = scmp.ne.s32.totalorder %s205, %s208
      %p214 = scmp.eq.s32.totalorder %s22, 0
      %p215 = por %p213, %p214
      %p216 = scmp.ne.s32.totalorder %s205, %s208
      %p217 = scmp.eq.s32.totalorder %s27, 1
      %p218 = por %p216, %p217
      %p219 = scmp.ne.s32.totalorder %s208, %s209
      %p220 = scmp.eq.s32.totalorder %s27, 0
      %p221 = por %p219, %p220
      %p222 = scmp.ne.s32.totalorder %s208, %s209
      %p223 = scmp.eq.s32.totalorder %s28, 1
      %p224 = por %p222, %p223
      %p226 = scmp.ne.s32.totalorder %s209, %s225
      %p227 = scmp.eq.s32.totalorder %s28, 0
      %p228 = por %p226, %p227
      %p229 = scmp.le.s32.totalorder 1, %s22
      %p230 = scmp.lt.s32.totalorder %s22, 3
      %p231 = pnand %p229, %p230
      %p232 = pneg %p231
      // Predicated region
      $region9: #{tpu_custom_call.1} parent=5 // pred_check
        _
      $region10: #{tpu_custom_call.1} parent=5 // pred_check_branch
        %234 = sbr.rel (%p231) target = $region12
      $region11: #{tpu_custom_call.1} parent=5 // pred_region
        %s235 = ssub.s32 %s22, 1
        // Predicated region
        $region13: #{tpu_custom_call.1} parent=11 // pred_check
          %p236 = pneg %p69
        $region14: #{tpu_custom_call.1} parent=11 // pred_check_branch
          %238 = sbr.rel (%p236) target = $region16
        $region15: #{tpu_custom_call.1} parent=11 // pred_region
          %240 = vsyncadd [#allocation6], 0
          %s241 = sshll.u32 %s1, 4
          %s242 = int_to_ptr.hbm [resolvable:$true] %s241
          %s243 = sshll.u32 [#allocation5], 4
          %s244 = int_to_ptr.vmem [resolvable:$true] %s243
          %249 = dma.hbm_to_vmem [thread:$0]  %s242, 512, %s244, [#allocation6], 128, 128, 8
        $region16: #{tpu_custom_call.1} parent=11 // pred_fallthru
          _
        // Predicated region
        $region17: #{tpu_custom_call.1} parent=11 // pred_check
          %p250 = pneg %p90
        $region18: #{tpu_custom_call.1} parent=11 // pred_check_branch
          %252 = sbr.rel (%p250) target = $region20
        $region19: #{tpu_custom_call.1} parent=11 // pred_region
          _
        $region20: #{tpu_custom_call.1} parent=11 // pred_fallthru
          _
        // Predicated region
        $region21: #{tpu_custom_call.1} parent=11 // pred_check
          %p253 = pneg %p111
        $region22: #{tpu_custom_call.1} parent=11 // pred_check_branch
          %255 = sbr.rel (%p253) target = $region24
        $region23: #{tpu_custom_call.1} parent=11 // pred_region
          %257 = vsyncadd [#allocation6], 0
          %s258 = sshll.u32 %s3, 4
          %s259 = int_to_ptr.hbm [resolvable:$true] %s258
          %s260 = sshll.u32 [#allocation7], 4
          %s261 = int_to_ptr.vmem [resolvable:$true] %s260
          %266 = dma.hbm_to_vmem [thread:$0]  %s259, 512, %s261, [#allocation6], 128, 128, 8
        $region24: #{tpu_custom_call.1} parent=11 // pred_fallthru
          _
        // Predicated region
        $region25: #{tpu_custom_call.1} parent=11 // pred_check
          %p267 = pneg %p132
        $region26: #{tpu_custom_call.1} parent=11 // pred_check_branch
          %269 = sbr.rel (%p267) target = $region28
        $region27: #{tpu_custom_call.1} parent=11 // pred_region
          _
        $region28: #{tpu_custom_call.1} parent=11 // pred_fallthru
          _
        // Predicated region
        $region29: #{tpu_custom_call.1} parent=11 // pred_check
          %p270 = pneg %p153
        $region30: #{tpu_custom_call.1} parent=11 // pred_check_branch
          %272 = sbr.rel (%p270) target = $region32
        $region31: #{tpu_custom_call.1} parent=11 // pred_region
          %274 = vsyncadd [#allocation9], 0
          %s275 = sshll.u32 %s5, 4
          %s276 = int_to_ptr.hbm [resolvable:$true] %s275
          %s277 = sshll.u32 [#allocation8], 4
          %s278 = int_to_ptr.vmem [resolvable:$true] %s277
          %283 = dma.hbm_to_vmem [thread:$0]  %s276, 512, %s278, [#allocation9], 128, 128, 8
        $region32: #{tpu_custom_call.1} parent=11 // pred_fallthru
          _
        // Predicated region
        $region33: #{tpu_custom_call.1} parent=11 // pred_check
          %p284 = pneg %p174
        $region34: #{tpu_custom_call.1} parent=11 // pred_check_branch
          %286 = sbr.rel (%p284) target = $region36
        $region35: #{tpu_custom_call.1} parent=11 // pred_region
          _
        $region36: #{tpu_custom_call.1} parent=11 // pred_fallthru
          _
        // Predicated region
        $region37: #{tpu_custom_call.1} parent=11 // pred_check
          %p287 = pneg %p195
        $region38: #{tpu_custom_call.1} parent=11 // pred_check_branch
          %289 = sbr.rel (%p287) target = $region40
        $region39: #{tpu_custom_call.1} parent=11 // pred_region
          %291 = vsyncadd [#allocation9], 0
          %s293 = sshll.u32 %s7, 4
          %s294 = int_to_ptr.hbm [resolvable:$true] %s293
          %s295 = sshll.u32 [#allocation10], 4
          %s296 = int_to_ptr.vmem [resolvable:$true] %s295
          %298 = dma.hbm_to_vmem [thread:$0]  %s294, 128, %s296, [#allocation9]
        $region40: #{tpu_custom_call.1} parent=11 // pred_fallthru
          _
      $region12: #{tpu_custom_call.1} parent=5 // pred_fallthru
        _
      %p299 = scmp.lt.s32.totalorder %s22, 2
      // Predicated region
      $region41: #{tpu_custom_call.1} parent=5 // pred_check
        %p300 = pneg %p299
      $region42: #{tpu_custom_call.1} parent=5 // pred_check_branch
        %302 = sbr.rel (%p300) target = $region44
      $region43: #{tpu_custom_call.1} parent=5 // pred_region
        // Predicated region
        $region45: #{tpu_custom_call.1} parent=43 // pred_check
          %p303 = pneg %p42
        $region46: #{tpu_custom_call.1} parent=43 // pred_check_branch
          %305 = sbr.rel (%p303) target = $region48
        $region47: #{tpu_custom_call.1} parent=43 // pred_region
          %s306 = sand.u32 %s32, 1
          %s307 = scalar_lea.sflag [#allocation3], %s306
          %s308 = sand.u32 %s32, 1
          %s309 = smul.addr %s308, 8
          %s310 = scalar_lea.vmem [#allocation2], %s309
          %312 = vsyncadd %s307, 0
          %s313 = smul.addr %s22, 8
          %s314 = scalar_lea.hbm %s0, %s313
          %s316 = sshll.u32 %s314, 4
          %s317 = int_to_ptr.hbm [resolvable:$true] %s316
          %s318 = sshll.u32 %s310, 4
          %s319 = int_to_ptr.vmem [resolvable:$true] %s318
          %321 = dma.hbm_to_vmem [thread:$0]  %s317, 128, %s319, %s307
        $region48: #{tpu_custom_call.1} parent=43 // pred_fallthru
          _
      $region44: #{tpu_custom_call.1} parent=5 // pred_fallthru
        _
      %p322 = scmp.le.s32.totalorder 1, %s22
      %p323 = scmp.lt.s32.totalorder %s22, 3
      %p324 = pnand %p322, %p323
      %p325 = pneg %p324
      // Predicated region
      $region49: #{tpu_custom_call.1} parent=5 // pred_check
        _
      $region50: #{tpu_custom_call.1} parent=5 // pred_check_branch
        %327 = sbr.rel (%p324) target = $region52
      $region51: #{tpu_custom_call.1} parent=5 // pred_region
        %s328 = ssub.s32 %s22, 1
        %s329 = sand.u32 %s35, 1
        %s330 = scalar_lea.sflag [#allocation3], %s329
        %s331 = sand.u32 %s35, 1
        %s332 = smul.addr %s331, 8
        %s333 = scalar_lea.vmem [#allocation2], %s332
        // Predicated region
        $region53: #{tpu_custom_call.1} parent=51 // pred_check
          %p334 = pneg %p48
        $region54: #{tpu_custom_call.1} parent=51 // pred_check_branch
          %336 = sbr.rel (%p334) target = $region56
        $region55: #{tpu_custom_call.1} parent=51 // pred_region
          %338 = dma.done %s330, 128
        $region56: #{tpu_custom_call.1} parent=51 // pred_fallthru
          _
        // Predicated region
        $region57: #{tpu_custom_call.1} parent=51 // pred_check
          %p339 = pneg %p69
        $region58: #{tpu_custom_call.1} parent=51 // pred_check_branch
          %341 = sbr.rel (%p339) target = $region60
        $region59: #{tpu_custom_call.1} parent=51 // pred_region
          %343 = dma.done [#allocation6], 512
        $region60: #{tpu_custom_call.1} parent=51 // pred_fallthru
          _
        // Predicated region
        $region61: #{tpu_custom_call.1} parent=51 // pred_check
          %p344 = pneg %p111
        $region62: #{tpu_custom_call.1} parent=51 // pred_check_branch
          %346 = sbr.rel (%p344) target = $region64
        $region63: #{tpu_custom_call.1} parent=51 // pred_region
          %348 = dma.done [#allocation6], 512
        $region64: #{tpu_custom_call.1} parent=51 // pred_fallthru
          _
        // Predicated region
        $region65: #{tpu_custom_call.1} parent=51 // pred_check
          %p349 = pneg %p153
        $region66: #{tpu_custom_call.1} parent=51 // pred_check_branch
          %351 = sbr.rel (%p349) target = $region68
        $region67: #{tpu_custom_call.1} parent=51 // pred_region
          %353 = dma.done [#allocation9], 512
        $region68: #{tpu_custom_call.1} parent=51 // pred_fallthru
          _
        // Predicated region
        $region69: #{tpu_custom_call.1} parent=51 // pred_check
          %p354 = pneg %p195
        $region70: #{tpu_custom_call.1} parent=51 // pred_check_branch
          %356 = sbr.rel (%p354) target = $region72
        $region71: #{tpu_custom_call.1} parent=51 // pred_region
          %358 = dma.done [#allocation9], 128
        $region72: #{tpu_custom_call.1} parent=51 // pred_fallthru
          _
        %s359 = sand.u32 %s35, 1
        %s360 = scalar_lea.sflag [#allocation3], %s359
        %s361 = sand.u32 %s35, 1
        %s362 = smul.addr %s361, 8
        %s363 = scalar_lea.vmem [#allocation2], %s362
        %p364 = pneg %p48
        %p365 = pneg %p45
        %p366 = pneg %p69
        %p367 = pneg %p66
        %p368 = pneg %p90
        %p369 = pneg %p87
        %p370 = pneg %p111
        %p371 = pneg %p108
        %p372 = pneg %p132
        %p373 = pneg %p129
        %p374 = pneg %p153
        %p375 = pneg %p150
        %p376 = pneg %p174
        %p377 = pneg %p171
        %p378 = pneg %p195
        %p379 = pneg %p192
        %p380 = pneg %p221
        %p381 = pneg %p218
        %s382 = sand.u32 %s208, 1
        %s383 = scalar_lea.sflag [#allocation4], %s382
        %s384 = sand.u32 %s208, 1
        %s385 = smul.addr %s384, 2
        %s386 = scalar_lea.vmem [#allocation11], %s385
        %v387 = vld [vmem:[%s333] sm:$0xff]
        %v388 = vld [vmem:[#allocation5] sm:$0xff]
        %v389 = vld [vmem:[#allocation5 + $0x8] sm:$0xff]
        %v390 = vld [vmem:[#allocation5 + $0x10] sm:$0xff]
        %v391 = vld [vmem:[#allocation5 + $0x18] sm:$0xff]
        %v392 = vld [vmem:[%s2] sm:$0x1]
        %v394 = vperm.slane %v392, 0
        %vm396 = vcmask 261120
        %v398 = vsel %vm396, %v387, 0
        %400 = vmatpush.msra.mxu0 0.0
        %401 = vmatpush.msra.mxu0 0.0
        %402 = vmatpush.msra.mxu0 0.0
        %403 = vmatpush.msra.mxu0 0.0
        %404 = vmatpush.msra.mxu0 0.0
        %405 = vmatpush.msra.mxu0 0.0
        %406 = vmatpush.msra.mxu0 0.0
        %407 = vmatpush.msra.mxu0 0.0
        %408 = vmatpush.msra.mxu0 0.0
        %409 = vmatpush.msra.mxu0 0.0
        %410 = vmatpush.msra.mxu0 0.0
        %411 = vmatpush.msra.mxu0 0.0
        %412 = vmatpush.msra.mxu0 %v391
        %413 = vmatpush.msra.mxu0 %v390
        %414 = vmatpush.msra.mxu0 %v389
        %415 = vmatpush.msra.mxu0 %v388
        %416 = vmatmul.f32.gmra.mxu0 %v398
        %v417 = vpop.f32.mrf.mxu0
        %v418 = vadd.f32 %v394, %v417
        %419 = vdwg.mxu0
        %v420 = vmax.f32 %v418, 0.0
        %v421 = vld [vmem:[#allocation7] sm:$0xff]
        %v422 = vld [vmem:[#allocation7 + $0x8] sm:$0xff]
        %v423 = vld [vmem:[#allocation7 + $0x10] sm:$0xff]
        %v424 = vld [vmem:[#allocation7 + $0x18] sm:$0xff]
        %v425 = vld [vmem:[%s4] sm:$0x1]
        %v427 = vperm.slane %v425, 0
        %v430 = vsel %vm396, %v420, 0
        %432 = vmatpush.msra.mxu0 0.0
        %433 = vmatpush.msra.mxu0 0.0
        %434 = vmatpush.msra.mxu0 0.0
        %435 = vmatpush.msra.mxu0 0.0
        %436 = vmatpush.msra.mxu0 0.0
        %437 = vmatpush.msra.mxu0 0.0
        %438 = vmatpush.msra.mxu0 0.0
        %439 = vmatpush.msra.mxu0 0.0
        %440 = vmatpush.msra.mxu0 0.0
        %441 = vmatpush.msra.mxu0 0.0
        %442 = vmatpush.msra.mxu0 0.0
        %443 = vmatpush.msra.mxu0 0.0
        %444 = vmatpush.msra.mxu0 %v424
        %445 = vmatpush.msra.mxu0 %v423
        %446 = vmatpush.msra.mxu0 %v422
        %447 = vmatpush.msra.mxu0 %v421
        %448 = vmatmul.f32.gmra.mxu0 %v430
        %v449 = vpop.f32.mrf.mxu0
        %v450 = vadd.f32 %v427, %v449
        %451 = vdwg.mxu0
        %v452 = vmax.f32 %v450, 0.0
        %v453 = vld [vmem:[#allocation8] sm:$0xff]
        %v454 = vld [vmem:[#allocation8 + $0x8] sm:$0xff]
        %v455 = vld [vmem:[#allocation8 + $0x10] sm:$0xff]
        %v456 = vld [vmem:[#allocation8 + $0x18] sm:$0xff]
        %v458 = vsel %vm396, %v452, 0
        %460 = vmatpush.msra.mxu0 0.0
        %461 = vmatpush.msra.mxu0 0.0
        %462 = vmatpush.msra.mxu0 0.0
        %463 = vmatpush.msra.mxu0 0.0
        %464 = vmatpush.msra.mxu0 0.0
        %465 = vmatpush.msra.mxu0 0.0
        %466 = vmatpush.msra.mxu0 0.0
        %467 = vmatpush.msra.mxu0 0.0
        %468 = vmatpush.msra.mxu0 0.0
        %469 = vmatpush.msra.mxu0 0.0
        %470 = vmatpush.msra.mxu0 0.0
        %471 = vmatpush.msra.mxu0 0.0
        %472 = vmatpush.msra.mxu0 %v456
        %473 = vmatpush.msra.mxu0 %v455
        %474 = vmatpush.msra.mxu0 %v454
        %475 = vmatpush.msra.mxu0 %v453
        %476 = vmatmul.f32.gmra.mxu0 %v458
        %v477 = vpop.f32.mrf.mxu0
        %v478 = vadd.f32 0.0, %v477
        %479 = vdwg.mxu0
        %v480 = vld [vmem:[#allocation10] sm:$0xff]
        %v481 = vmul.f32 %v478, %v480
        %v483 = vrot.slane %v481, 4
        %vm485 = vcmask 1043456
        %v486 = vsel %vm485, %v481, 0.0
        %v487 = vrot.slane %v486, 4
        %v488 = vadd.f32 %v486, %v487
        %v489 = vrot.slane %v488, 2
        %v490 = vadd.f32 %v488, %v489
        %v491 = vrot.slane %v490, 1
        %v492 = vadd.f32 %v490, %v491
        %v493 = vsel %vm485, %v483, 0.0
        %v494 = vrot.slane %v493, 4
        %v495 = vadd.f32 %v493, %v494
        %v496 = vrot.slane %v495, 2
        %v497 = vadd.f32 %v495, %v496
        %v498 = vrot.slane %v497, 1
        %v499 = vadd.f32 %v497, %v498
        %v500 = vld [vmem:[%s6] sm:$0x1]
        %v502 = vperm.slane %v500, 0
        %v504 = vadd.f32 %v492, %v502
        %v505 = vadd.f32 %v499, %v502
        %v508 = vrot.slane %v505, 7
        %vm509 = vcmask 1041409
        %v510 = vsel %vm509, %v508, %v504
        %512 = vst [vmem:[%s386] sm:$0x3] %v510
        %s513 = sand.u32 %s208, 1
        %s514 = scalar_lea.sflag [#allocation4], %s513
        %s515 = sand.u32 %s208, 1
        %s516 = smul.addr %s515, 2
        %s517 = scalar_lea.vmem [#allocation11], %s516
        // Predicated region
        $region73: #{tpu_custom_call.1} parent=51 // pred_check
          %p518 = pneg %p218
        $region74: #{tpu_custom_call.1} parent=51 // pred_check_branch
          %520 = sbr.rel (%p518) target = $region76
        $region75: #{tpu_custom_call.1} parent=51 // pred_region
          %522 = vsyncadd %s514, 0
          %s523 = smul.addr %s27, 2
          %s524 = scalar_lea.hbm %s8, %s523
          %s526 = sshll.u32 %s517, 4
          %s527 = int_to_ptr.vmem [resolvable:$true] %s526
          %s528 = sshll.u32 %s524, 4
          %s529 = int_to_ptr.hbm [resolvable:$true] %s528
          %531 = dma.vmem_to_hbm [thread:$0]  %s527, 32, %s529, %s514
        $region76: #{tpu_custom_call.1} parent=51 // pred_fallthru
          _
      $region52: #{tpu_custom_call.1} parent=5 // pred_fallthru
        _
      %p532 = scmp.le.s32.totalorder 2, %s22
      // Predicated region
      $region77: #{tpu_custom_call.1} parent=5 // pred_check
        %p533 = pneg %p532
      $region78: #{tpu_custom_call.1} parent=5 // pred_check_branch
        %535 = sbr.rel (%p533) target = $region80
      $region79: #{tpu_custom_call.1} parent=5 // pred_region
        %s536 = ssub.s32 %s22, 2
        // Predicated region
        $region81: #{tpu_custom_call.1} parent=79 // pred_check
          %p537 = pneg %p224
        $region82: #{tpu_custom_call.1} parent=79 // pred_check_branch
          %539 = sbr.rel (%p537) target = $region84
        $region83: #{tpu_custom_call.1} parent=79 // pred_region
          %s540 = sand.u32 %s209, 1
          %s541 = scalar_lea.sflag [#allocation4], %s540
          %s542 = sand.u32 %s209, 1
          %s543 = smul.addr %s542, 2
          %s544 = scalar_lea.vmem [#allocation11], %s543
          %546 = dma.done %s541, 32
        $region84: #{tpu_custom_call.1} parent=79 // pred_fallthru
          _
      $region80: #{tpu_custom_call.1} parent=5 // pred_fallthru
        _
    $region6: #{tpu_custom_call.1} parent=1 // loop_footer
      %s26 = sadd.s32 1, %s22
    $region7: #{tpu_custom_call.1} parent=1 // loop_footer_branch
      %21 = sbr.rel target = $region3
    $region8: #{tpu_custom_call.1} parent=1 // loop_exit
      _
    %547 = vsyncpa [#allocation3], 1
    %s548 = scalar_lea.sflag [#allocation3], 1
    %549 = vsyncpa %s548, 1
    %550 = vsyncpa [#allocation6], 1
    %551 = vsyncpa [#allocation9], 1
    %552 = vsyncpa [#allocation4], 1
    %s553 = scalar_lea.sflag [#allocation4], 1
    %554 = vsyncpa %s553, 1

</llo_original>
